<compile_context>
chip_gen: v6e
topology: v6e:2x2x1
jax: 0.10.0
libtpu: 0.0.40
codegen_flags: <defaults>
</compile_context>

<pallas_src>
from functools import partial

import jax
import jax.numpy as jnp
from jax.experimental import pallas as pl
from jax.experimental.pallas import tpu as pltpu


def _fused_mbconv_kernel(slab_ref, wband_ref, b1_ref, wproj_ref, b2_ref,
                         out_ref, *, B, H, K, pad):
    """One grid step processes B images.

    slab_ref  : (B, H + 2*pad, W*Cin)  height-zero-padded NHWC input, lane-dense
    wband_ref : (K, W*Cin, W*Cexp)     banded 3x3-conv weights (BN1 scale folded;
                                       band encodes dx taps + width zero padding)
    b1_ref    : (1, W*Cexp)            BN1 bias, tiled per pixel column
    wproj_ref : (W*Cexp, W*Cout)       block-diagonal 1x1-conv weight (BN2 folded)
    b2_ref    : (1, W*Cout)            BN2 bias, tiled
    out_ref   : (B, H, W*Cout)         lane-dense output
    """
    w_cin = slab_ref.shape[-1]
    w_cexp = wband_ref.shape[-1]
    w_cout = out_ref.shape[-1]

    # ---- expand 3x3 conv: one MXU matmul per kernel row, f32 accumulation ----
    acc = jnp.zeros((B * H, w_cexp), jnp.float32)
    for dy in range(K):                                     # unrolled, K=3
        lhs = slab_ref[:, dy:dy + H, :].reshape(B * H, w_cin)
        acc = acc + jnp.dot(lhs, wband_ref[dy],
                            preferred_element_type=jnp.float32)

    h = acc + b1_ref[...]
    h = h * jax.nn.sigmoid(h)                               # SiLU

    # ---- project 1x1 conv (block-diagonal weight keeps lanes dense) ----
    y = jnp.dot(h, wproj_ref[...],
                preferred_element_type=jnp.float32) + b2_ref[...]

    # ---- residual shortcut: lane-aligned centre rows of the resident slab.
    #      DropPath is identity in eval mode.
    y = y + slab_ref[:, pad:pad + H, :].reshape(B * H, w_cout)

    out_ref[...] = y.reshape(B, H, w_cout).astype(out_ref.dtype)


def fused_mbconv_forward(x_nchw, params, *, kernel_size=3, images_per_step=2):
    """x_nchw: (N, Cin, H, W) float32.  Returns (N, Cout, H, W).

    images_per_step (B): images per grid step.  Choose so grid = N // B stays an
    even number >= 4 (keeps both v7x TensorCores busy and lets the BlockSpec
    double-buffer overlap DMA with compute) while each step does enough work to
    amortize the ~0.35 us per-step pipeline overhead.
    """
    K = kernel_size
    assert K % 2 == 1, "SAME-padded odd kernel assumed"
    pad = (K - 1) // 2
    w3, s1, b1, w1, s2, b2 = params
    Cin, Cexp = w3.shape[2], w3.shape[3]
    Cout = w1.shape[1]
    N, _, H, W = x_nchw.shape

    assert Cin == Cout, "has_shortcut path requires input_c == out_c (stride=1)"
    assert (W * Cin) % 128 == 0 and (W * Cout) % 128 == 0, \
        "lane-dense layout requires W*C to be a multiple of 128"
    assert N % images_per_step == 0
    B = images_per_step
    f32 = jnp.float32

    # ---- fold eval-mode BN scales into the conv weights -----------------------
    w3f = w3.astype(f32) * s1.reshape(1, 1, 1, Cexp)          # (K, K, Cin, Cexp)
    w1f = w1.astype(f32) * s2.reshape(1, Cout)                # (Cexp, Cout)

    # Banded expand weights:
    #   wband[dy][(w+dx-1)*Cin + c, w*Cexp + e] = w3f[dy, dx, c, e]
    # (taps with w+dx-1 outside [0, W) are simply absent == SAME zero padding).
    wband = jnp.stack([
        sum(jnp.kron(jnp.eye(W, k=1 - dx, dtype=f32), w3f[dy, dx])
            for dx in range(K))
        for dy in range(K)])                                  # (K, W*Cin, W*Cexp)

    # Block-diagonal projection weight keeps the second matmul lane-dense.
    wproj = jnp.kron(jnp.eye(W, dtype=f32), w1f)              # (W*Cexp, W*Cout)

    b1t = jnp.tile(b1.reshape(1, Cexp), (1, W)).astype(f32)   # (1, W*Cexp)
    b2t = jnp.tile(b2.reshape(1, Cout), (1, W)).astype(f32)   # (1, W*Cout)

    # ---- height-padded, lane-dense NHWC slab: the single per-image input stream
    x_nhwc = jnp.transpose(x_nchw, (0, 2, 3, 1))
    slab = jnp.pad(x_nhwc, ((0, 0), (pad, pad), (0, 0), (0, 0)))
    slab = slab.reshape(N, H + 2 * pad, W * Cin)

    kernel = partial(_fused_mbconv_kernel, B=B, H=H, K=K, pad=pad)

    out = pl.pallas_call(
        kernel,
        out_shape=jax.ShapeDtypeStruct((N, H, W * Cout), x_nchw.dtype),
        grid_spec=pltpu.PrefetchScalarGridSpec(
            num_scalar_prefetch=0,
            grid=(N // B,),
            in_specs=[
                pl.BlockSpec((B, H + 2 * pad, W * Cin), lambda n: (n, 0, 0)),
                pl.BlockSpec((K, W * Cin, W * Cexp), lambda n: (0, 0, 0)),
                pl.BlockSpec((1, W * Cexp), lambda n: (0, 0)),
                pl.BlockSpec((W * Cexp, W * Cout), lambda n: (0, 0)),
                pl.BlockSpec((1, W * Cout), lambda n: (0, 0)),
            ],
            out_specs=pl.BlockSpec((B, H, W * Cout), lambda n: (n, 0, 0)),
        ),
        compiler_params=pltpu.CompilerParams(
            dimension_semantics=("parallel",),
            vmem_limit_bytes=32 * 1024 * 1024),
    )(slab, wband, b1t, wproj, b2t)

    out = out.reshape(N, H, W, Cout)
    # TODO(synk): if the surrounding model consumes NHWC, drop this transpose and
    #             the NCHW->NHWC one above entirely (they are pure layout passes).
    return jnp.transpose(out, (0, 3, 1, 2))


def make_params(key, Cin, Cexp, Cout, K, eps=1e-5):
    """Deterministic synthetic params; BN (eval) folded into scale/bias."""
    ks = jax.random.split(key, 10)
    # expand conv weight: torch layout (Cexp, Cin, K, K) -> HWIO (K, K, Cin, Cexp)
    w3 = 0.1 * jax.random.normal(ks[0], (K, K, Cin, Cexp), jnp.float32)
    g1 = 1.0 + 0.1 * jax.random.normal(ks[1], (Cexp,), jnp.float32)
    be1 = 0.1 * jax.random.normal(ks[2], (Cexp,), jnp.float32)
    mu1 = 0.1 * jax.random.normal(ks[3], (Cexp,), jnp.float32)
    var1 = jnp.abs(jax.random.normal(ks[4], (Cexp,), jnp.float32)) + 0.5
    # project 1x1 conv weight: (Cout, Cexp, 1, 1) -> (Cexp, Cout)
    w1 = 0.1 * jax.random.normal(ks[5], (Cexp, Cout), jnp.float32)
    g2 = 1.0 + 0.1 * jax.random.normal(ks[6], (Cout,), jnp.float32)
    be2 = 0.1 * jax.random.normal(ks[7], (Cout,), jnp.float32)
    mu2 = 0.1 * jax.random.normal(ks[8], (Cout,), jnp.float32)
    var2 = jnp.abs(jax.random.normal(ks[9], (Cout,), jnp.float32)) + 0.5

    s1 = (g1 / jnp.sqrt(var1 + eps)).reshape(1, Cexp)
    b1 = (be1 - mu1 * g1 / jnp.sqrt(var1 + eps)).reshape(1, Cexp)
    s2 = (g2 / jnp.sqrt(var2 + eps)).reshape(1, Cout)
    b2 = (be2 - mu2 * g2 / jnp.sqrt(var2 + eps)).reshape(1, Cout)
    return (w3, s1, b1, w1, s2, b2)


def reference_forward(x_nchw, params):
    """Plain-JAX reference (mirrors the PyTorch module, eval mode)."""
    w3, s1, b1, w1, s2, b2 = params
    x = jnp.transpose(x_nchw, (0, 2, 3, 1))
    dn = ("NHWC", "HWIO", "NHWC")
    y = jax.lax.conv_general_dilated(x, w3, (1, 1), "SAME", dimension_numbers=dn)
    y = y * s1[0] + b1[0]
    y = y * jax.nn.sigmoid(y)
    y = jax.lax.conv_general_dilated(
        y, w1.reshape(1, 1, *w1.shape), (1, 1), "SAME", dimension_numbers=dn)
    y = y * s2[0] + b2[0]
    y = y + x
    return jnp.transpose(y, (0, 3, 1, 2))


if __name__ == "__main__":
    N, Cin, H, W = 8, 8, 16, 16
    K, expand_ratio = 3, 4
    Cexp, Cout = Cin * expand_ratio, Cin   # has_shortcut => out_c == input_c

    key = jax.random.PRNGKey(0)
    kx, kp = jax.random.split(key)
    x = jax.random.normal(kx, (N, Cin, H, W), jnp.float32)
    params = make_params(kp, Cin, Cexp, Cout, K)

    ref = jax.block_until_ready(reference_forward(x, params))

    fwd = jax.jit(fused_mbconv_forward,
                  static_argnames=("kernel_size", "images_per_step"))

    # grid=(4,): even, >=4 steps -> DMA/compute overlap, both v7x TCs used.
    out = jax.block_until_ready(fwd(x, params, kernel_size=K, images_per_step=2))
    assert out.shape == (N, Cout, H, W)
    assert jnp.allclose(out, ref, atol=1e-4, rtol=1e-4), \
        f"max err {jnp.max(jnp.abs(out - ref))}"

    # one image per step (grid=(8,)) also verified.
    out2 = jax.block_until_ready(fwd(x, params, kernel_size=K, images_per_step=1))
    assert jnp.allclose(out2, ref, atol=1e-4, rtol=1e-4), \
        f"max err {jnp.max(jnp.abs(out2 - ref))}"

    print("KERNEL_OK")
</pallas_src>

<mosaic_0001>
module attributes {stable_mosaic.version = 11 : i64} {
  func.func @_fused_mbconv_kernel(%arg0: i32, %arg1: memref<2x18x128xf32, #tpu.memory_space<vmem>>, %arg2: memref<3x128x512xf32, #tpu.memory_space<vmem>>, %arg3: memref<1x512xf32, #tpu.memory_space<vmem>>, %arg4: memref<512x128xf32, #tpu.memory_space<vmem>>, %arg5: memref<1x128xf32, #tpu.memory_space<vmem>>, %arg6: memref<2x16x128xf32, #tpu.memory_space<vmem>>) attributes {dimension_semantics = [#tpu.dimension_semantics<parallel>], iteration_bounds = array<i64: 4>, scalar_prefetch = 0 : i64, scratch_operands = 0 : i64, tpu.core_type = #tpu.core_type<tc>, window_params = [{transform_indices = @transform_0, window_bounds = array<i64: 2, 18, 128>}, {pipeline_mode = #tpu.pipeline_mode<synchronous>, transform_indices = @transform_1, window_bounds = array<i64: 3, 128, 512>}, {pipeline_mode = #tpu.pipeline_mode<synchronous>, transform_indices = @transform_2, window_bounds = array<i64: 1, 512>}, {pipeline_mode = #tpu.pipeline_mode<synchronous>, transform_indices = @transform_3, window_bounds = array<i64: 512, 128>}, {pipeline_mode = #tpu.pipeline_mode<synchronous>, transform_indices = @transform_4, window_bounds = array<i64: 1, 128>}, {transform_indices = @transform_5, window_bounds = array<i64: 2, 16, 128>}]} {
    %cst = arith.constant 0.000000e+00 : f32
    %0 = vector.broadcast %cst : f32 to vector<32x512xf32>
    %c0 = arith.constant 0 : index
    %c0_0 = arith.constant 0 : index
    %c0_1 = arith.constant 0 : index
    %1 = vector.load %arg1[%c0, %c0_0, %c0_1] : memref<2x18x128xf32, #tpu.memory_space<vmem>>, vector<2x16x128xf32>
    %2 = vector.shape_cast %1 : vector<2x16x128xf32> to vector<32x128xf32>
    %c0_2 = arith.constant 0 : index
    %c0_3 = arith.constant 0 : index
    %c0_4 = arith.constant 0 : index
    %3 = vector.load %arg2[%c0_2, %c0_3, %c0_4] : memref<3x128x512xf32, #tpu.memory_space<vmem>>, vector<1x128x512xf32>
    %4 = vector.shape_cast %3 : vector<1x128x512xf32> to vector<128x512xf32>
    %cst_5 = arith.constant dense<0.000000e+00> : vector<32x512xf32>
    %5 = tpu.matmul %2, %4, %cst_5 {dimension_numbers = #tpu.dot_dimension_numbers<[1], [0], [0], [1], [0, 0, 1, 1], [], []>} : vector<32x128xf32>, vector<128x512xf32>, vector<32x512xf32> -> vector<32x512xf32>
    %6 = arith.addf %0, %5 : vector<32x512xf32>
    %c0_6 = arith.constant 0 : index
    %c1 = arith.constant 1 : index
    %c0_7 = arith.constant 0 : index
    %7 = vector.load %arg1[%c0_6, %c1, %c0_7] : memref<2x18x128xf32, #tpu.memory_space<vmem>>, vector<2x16x128xf32>
    %8 = vector.shape_cast %7 : vector<2x16x128xf32> to vector<32x128xf32>
    %c1_8 = arith.constant 1 : index
    %c0_9 = arith.constant 0 : index
    %c0_10 = arith.constant 0 : index
    %9 = vector.load %arg2[%c1_8, %c0_9, %c0_10] : memref<3x128x512xf32, #tpu.memory_space<vmem>>, vector<1x128x512xf32>
    %10 = vector.shape_cast %9 : vector<1x128x512xf32> to vector<128x512xf32>
    %cst_11 = arith.constant dense<0.000000e+00> : vector<32x512xf32>
    %11 = tpu.matmul %8, %10, %cst_11 {dimension_numbers = #tpu.dot_dimension_numbers<[1], [0], [0], [1], [0, 0, 1, 1], [], []>} : vector<32x128xf32>, vector<128x512xf32>, vector<32x512xf32> -> vector<32x512xf32>
    %12 = arith.addf %6, %11 : vector<32x512xf32>
    %c0_12 = arith.constant 0 : index
    %c2 = arith.constant 2 : index
    %c0_13 = arith.constant 0 : index
    %13 = vector.load %arg1[%c0_12, %c2, %c0_13] : memref<2x18x128xf32, #tpu.memory_space<vmem>>, vector<2x16x128xf32>
    %14 = vector.shape_cast %13 : vector<2x16x128xf32> to vector<32x128xf32>
    %c2_14 = arith.constant 2 : index
    %c0_15 = arith.constant 0 : index
    %c0_16 = arith.constant 0 : index
    %15 = vector.load %arg2[%c2_14, %c0_15, %c0_16] : memref<3x128x512xf32, #tpu.memory_space<vmem>>, vector<1x128x512xf32>
    %16 = vector.shape_cast %15 : vector<1x128x512xf32> to vector<128x512xf32>
    %cst_17 = arith.constant dense<0.000000e+00> : vector<32x512xf32>
    %17 = tpu.matmul %14, %16, %cst_17 {dimension_numbers = #tpu.dot_dimension_numbers<[1], [0], [0], [1], [0, 0, 1, 1], [], []>} : vector<32x128xf32>, vector<128x512xf32>, vector<32x512xf32> -> vector<32x512xf32>
    %18 = arith.addf %12, %17 : vector<32x512xf32>
    %c0_18 = arith.constant 0 : index
    %c0_19 = arith.constant 0 : index
    %19 = vector.load %arg3[%c0_18, %c0_19] : memref<1x512xf32, #tpu.memory_space<vmem>>, vector<1x512xf32>
    %20 = vector.broadcast %19 : vector<1x512xf32> to vector<32x512xf32>
    %21 = arith.addf %18, %20 : vector<32x512xf32>
    %22 = arith.negf %21 : vector<32x512xf32>
    %23 = math.exp %22 : vector<32x512xf32>
    %cst_20 = arith.constant 1.000000e+00 : f32
    %24 = vector.broadcast %cst_20 : f32 to vector<32x512xf32>
    %25 = arith.addf %24, %23 : vector<32x512xf32>
    %26 = arith.divf %24, %25 : vector<32x512xf32>
    %27 = arith.mulf %21, %26 : vector<32x512xf32>
    %c0_21 = arith.constant 0 : index
    %c0_22 = arith.constant 0 : index
    %28 = vector.load %arg4[%c0_21, %c0_22] : memref<512x128xf32, #tpu.memory_space<vmem>>, vector<512x128xf32>
    %cst_23 = arith.constant dense<0.000000e+00> : vector<32x128xf32>
    %29 = tpu.matmul %27, %28, %cst_23 {dimension_numbers = #tpu.dot_dimension_numbers<[1], [0], [0], [1], [0, 0, 1, 1], [], []>} : vector<32x512xf32>, vector<512x128xf32>, vector<32x128xf32> -> vector<32x128xf32>
    %c0_24 = arith.constant 0 : index
    %c0_25 = arith.constant 0 : index
    %30 = vector.load %arg5[%c0_24, %c0_25] : memref<1x128xf32, #tpu.memory_space<vmem>>, vector<1x128xf32>
    %31 = vector.broadcast %30 : vector<1x128xf32> to vector<32x128xf32>
    %32 = arith.addf %29, %31 : vector<32x128xf32>
    %c0_26 = arith.constant 0 : index
    %c1_27 = arith.constant 1 : index
    %c0_28 = arith.constant 0 : index
    %33 = vector.load %arg1[%c0_26, %c1_27, %c0_28] : memref<2x18x128xf32, #tpu.memory_space<vmem>>, vector<2x16x128xf32>
    %34 = vector.shape_cast %33 : vector<2x16x128xf32> to vector<32x128xf32>
    %35 = arith.addf %32, %34 : vector<32x128xf32>
    %36 = vector.shape_cast %35 : vector<32x128xf32> to vector<2x16x128xf32>
    %c0_29 = arith.constant 0 : index
    %c0_30 = arith.constant 0 : index
    %c0_31 = arith.constant 0 : index
    %37 = vector.load %arg6[%c0_29, %c0_30, %c0_31] : memref<2x16x128xf32, #tpu.memory_space<vmem>>, vector<2x16x128xf32>
    tpu.vector_store %arg6[%c0_29, %c0_30, %c0_31], %36 {strides = array<i32>} : memref<2x16x128xf32, #tpu.memory_space<vmem>>, vector<2x16x128xf32>,
    return
  }
  func.func @transform_0(%arg0: i32) -> (i32, i32, i32) {
    %c0_i32 = arith.constant 0 : i32
    %c0_i32_0 = arith.constant 0 : i32
    %c0_i32_1 = arith.constant 0 : i32
    return %arg0, %c0_i32, %c0_i32_0 : i32, i32, i32
  }
  func.func @transform_1(%arg0: i32) -> (i32, i32, i32) {
    %c0_i32 = arith.constant 0 : i32
    %c0_i32_0 = arith.constant 0 : i32
    %c0_i32_1 = arith.constant 0 : i32
    %c0_i32_2 = arith.constant 0 : i32
    return %c0_i32, %c0_i32_0, %c0_i32_1 : i32, i32, i32
  }
  func.func @transform_2(%arg0: i32) -> (i32, i32) {
    %c0_i32 = arith.constant 0 : i32
    %c0_i32_0 = arith.constant 0 : i32
    %c0_i32_1 = arith.constant 0 : i32
    return %c0_i32, %c0_i32_0 : i32, i32
  }
  func.func @transform_3(%arg0: i32) -> (i32, i32) {
    %c0_i32 = arith.constant 0 : i32
    %c0_i32_0 = arith.constant 0 : i32
    %c0_i32_1 = arith.constant 0 : i32
    return %c0_i32, %c0_i32_0 : i32, i32
  }
  func.func @transform_4(%arg0: i32) -> (i32, i32) {
    %c0_i32 = arith.constant 0 : i32
    %c0_i32_0 = arith.constant 0 : i32
    %c0_i32_1 = arith.constant 0 : i32
    return %c0_i32, %c0_i32_0 : i32, i32
  }
  func.func @transform_5(%arg0: i32) -> (i32, i32, i32) {
    %c0_i32 = arith.constant 0 : i32
    %c0_i32_0 = arith.constant 0 : i32
    %c0_i32_1 = arith.constant 0 : i32
    return %arg0, %c0_i32, %c0_i32_0 : i32, i32, i32
  }
}

</mosaic_0001>

<llo_original>
// kernel: fused_mbconv_forward.1
$region0: #{fused_mbconv_forward.1}
  #allocation0 [shape = 'u32[]', space=smem, size = 0x4, offset = 0x4, fixed_abs, tag = 'smem constant byte address 0x4 - core index']
  #allocation1 [shape = 'u32[144,128]{1,0:T(1,128)}', space=vmem, size = 0x12000, scoped, tag = 'internal scratch']
  %s0 = inlined_call_operand.vmem [shape: f32[8,18,128], index: 0, kind: input, shape index: {}]
  %s1 = inlined_call_operand.vmem [shape: f32[3,128,512], index: 1, kind: input, shape index: {}]
  %s2 = inlined_call_operand.vmem [shape: f32[1,512], index: 2, kind: input, shape index: {}]
  %s3 = inlined_call_operand.vmem [shape: f32[512,128], index: 3, kind: input, shape index: {}]
  %s4 = inlined_call_operand.vmem [shape: f32[1,128], index: 4, kind: input, shape index: {}]
  %s5 = inlined_call_operand.vmem [shape: f32[8,16,128], index: 5, kind: output, shape index: {}]
  %s6 = sld [smem:[#allocation0]]
  $region53: #{fused_mbconv_forward.1} parent=0
    _
  %s8 = ssub.s32 1, %s6
  %s9 = scalar_select 0, %s8, %s6
  loop: start=0, step=1, limit=6
  $region2: #{fused_mbconv_forward.1} parent=0 // loop_pre_header
    _
  $region3: #{fused_mbconv_forward.1} parent=0 // loop_header
    %s11 = sphi 0, %s15
    %p12 = scmp.ge.s32.totalorder %s11, 6
    %s21 = sphi 0, %s23
    %s24 = sphi 0, %s21
    %s25 = sphi 0, %s24
    %s41 = sphi 0, %s25
    %s45 = sphi 0, %s45
    %s47 = sphi 0, %s45
    %s48 = sphi 0, %s47
    %s62 = sphi 0, %s48
    %s66 = sphi 0, %s66
    %s68 = sphi 0, %s66
    %s69 = sphi 0, %s68
    %s83 = sphi 0, %s69
    %s87 = sphi 0, %s87
    %s89 = sphi 0, %s87
    %s90 = sphi 0, %s89
    %s104 = sphi 0, %s90
    %s108 = sphi 0, %s108
    %s110 = sphi 0, %s108
    %s111 = sphi 0, %s110
    %s125 = sphi 0, %s111
    %s131 = sphi 0, %s133
    %s134 = sphi 0, %s131
    %s135 = sphi 0, %s134
    %s151 = sphi 0, %s135
  $region4: #{fused_mbconv_forward.1} parent=0 // loop_header_branch
    %14 = sbr.rel (%p12) target = $region8
  $region5: #{fused_mbconv_forward.1} parent=0 // loop_body
    %s16 = ssub.s32 %s11, 1
    %s17 = ssub.s32 %s11, 2
    %s18 = sadd.s32 %s11, 1
    %s19 = ssub.s32 %s11, %s18
    %p20 = scmp.eq.s32.totalorder %s19, 0
    %s22 = sadd.s32 %s21, 1
    %s23 = scalar_select %p20, %s21, %s22
    %p26 = pneg %p20
    %p27 = scmp.eq.s32.totalorder %s11, 3
    %p28 = por %p26, %p27
    %p29 = scmp.ne.s32.totalorder %s21, %s24
    %p30 = scmp.eq.s32.totalorder %s11, 0
    %p31 = por %p29, %p30
    %p32 = scmp.ne.s32.totalorder %s21, %s24
    %p33 = scmp.eq.s32.totalorder %s16, 3
    %p34 = por %p32, %p33
    %p35 = scmp.ne.s32.totalorder %s24, %s25
    %p36 = scmp.eq.s32.totalorder %s16, 0
    %p37 = por %p35, %p36
    %p38 = scmp.ne.s32.totalorder %s24, %s25
    %p39 = scmp.eq.s32.totalorder %s17, 3
    %p40 = por %p38, %p39
    %p42 = scmp.ne.s32.totalorder %s25, %s41
    %p43 = scmp.eq.s32.totalorder %s17, 0
    %p44 = por %p42, %p43
    %s46 = sadd.s32 %s45, 1
    %p49 = scmp.eq.s32.totalorder %s11, 3
    %p50 = scmp.ne.s32.totalorder %s45, %s47
    %p51 = scmp.eq.s32.totalorder %s11, 0
    %p52 = por %p50, %p51
    %p53 = scmp.ne.s32.totalorder %s45, %s47
    %p54 = scmp.eq.s32.totalorder %s16, 3
    %p55 = por %p53, %p54
    %p56 = scmp.ne.s32.totalorder %s47, %s48
    %p57 = scmp.eq.s32.totalorder %s16, 0
    %p58 = por %p56, %p57
    %p59 = scmp.ne.s32.totalorder %s47, %s48
    %p60 = scmp.eq.s32.totalorder %s17, 3
    %p61 = por %p59, %p60
    %p63 = scmp.ne.s32.totalorder %s48, %s62
    %p64 = scmp.eq.s32.totalorder %s17, 0
    %p65 = por %p63, %p64
    %s67 = sadd.s32 %s66, 1
    %p70 = scmp.eq.s32.totalorder %s11, 3
    %p71 = scmp.ne.s32.totalorder %s66, %s68
    %p72 = scmp.eq.s32.totalorder %s11, 0
    %p73 = por %p71, %p72
    %p74 = scmp.ne.s32.totalorder %s66, %s68
    %p75 = scmp.eq.s32.totalorder %s16, 3
    %p76 = por %p74, %p75
    %p77 = scmp.ne.s32.totalorder %s68, %s69
    %p78 = scmp.eq.s32.totalorder %s16, 0
    %p79 = por %p77, %p78
    %p80 = scmp.ne.s32.totalorder %s68, %s69
    %p81 = scmp.eq.s32.totalorder %s17, 3
    %p82 = por %p80, %p81
    %p84 = scmp.ne.s32.totalorder %s69, %s83
    %p85 = scmp.eq.s32.totalorder %s17, 0
    %p86 = por %p84, %p85
    %s88 = sadd.s32 %s87, 1
    %p91 = scmp.eq.s32.totalorder %s11, 3
    %p92 = scmp.ne.s32.totalorder %s87, %s89
    %p93 = scmp.eq.s32.totalorder %s11, 0
    %p94 = por %p92, %p93
    %p95 = scmp.ne.s32.totalorder %s87, %s89
    %p96 = scmp.eq.s32.totalorder %s16, 3
    %p97 = por %p95, %p96
    %p98 = scmp.ne.s32.totalorder %s89, %s90
    %p99 = scmp.eq.s32.totalorder %s16, 0
    %p100 = por %p98, %p99
    %p101 = scmp.ne.s32.totalorder %s89, %s90
    %p102 = scmp.eq.s32.totalorder %s17, 3
    %p103 = por %p101, %p102
    %p105 = scmp.ne.s32.totalorder %s90, %s104
    %p106 = scmp.eq.s32.totalorder %s17, 0
    %p107 = por %p105, %p106
    %s109 = sadd.s32 %s108, 1
    %p112 = scmp.eq.s32.totalorder %s11, 3
    %p113 = scmp.ne.s32.totalorder %s108, %s110
    %p114 = scmp.eq.s32.totalorder %s11, 0
    %p115 = por %p113, %p114
    %p116 = scmp.ne.s32.totalorder %s108, %s110
    %p117 = scmp.eq.s32.totalorder %s16, 3
    %p118 = por %p116, %p117
    %p119 = scmp.ne.s32.totalorder %s110, %s111
    %p120 = scmp.eq.s32.totalorder %s16, 0
    %p121 = por %p119, %p120
    %p122 = scmp.ne.s32.totalorder %s110, %s111
    %p123 = scmp.eq.s32.totalorder %s17, 3
    %p124 = por %p122, %p123
    %p126 = scmp.ne.s32.totalorder %s111, %s125
    %p127 = scmp.eq.s32.totalorder %s17, 0
    %p128 = por %p126, %p127
    %s129 = ssub.s32 %s11, %s18
    %p130 = scmp.eq.s32.totalorder %s129, 0
    %s132 = sadd.s32 %s131, 1
    %s133 = scalar_select %p130, %s131, %s132
    %p136 = pneg %p130
    %p137 = scmp.eq.s32.totalorder %s11, 3
    %p138 = por %p136, %p137
    %p139 = scmp.ne.s32.totalorder %s131, %s134
    %p140 = scmp.eq.s32.totalorder %s11, 0
    %p141 = por %p139, %p140
    %p142 = scmp.ne.s32.totalorder %s131, %s134
    %p143 = scmp.eq.s32.totalorder %s16, 3
    %p144 = por %p142, %p143
    %p145 = scmp.ne.s32.totalorder %s134, %s135
    %p146 = scmp.eq.s32.totalorder %s16, 0
    %p147 = por %p145, %p146
    %p148 = scmp.ne.s32.totalorder %s134, %s135
    %p149 = scmp.eq.s32.totalorder %s17, 3
    %p150 = por %p148, %p149
    %p152 = scmp.ne.s32.totalorder %s135, %s151
    %p153 = scmp.eq.s32.totalorder %s17, 0
    %p154 = por %p152, %p153
    %p155 = scmp.le.s32.totalorder 1, %s11
    %p156 = scmp.lt.s32.totalorder %s11, 5
    %p157 = pnand %p155, %p156
    %p158 = pneg %p157
    // Predicated region
    $region9: #{fused_mbconv_forward.1} parent=5 // pred_check
      _
    $region10: #{fused_mbconv_forward.1} parent=5 // pred_check_branch
      %160 = sbr.rel (%p157) target = $region12
    $region11: #{fused_mbconv_forward.1} parent=5 // pred_region
      %s161 = ssub.s32 %s11, 1
      // Predicated region
      $region13: #{fused_mbconv_forward.1} parent=11 // pred_check
        %p162 = pneg %p58
      $region14: #{fused_mbconv_forward.1} parent=11 // pred_check_branch
        %164 = sbr.rel (%p162) target = $region16
      $region15: #{fused_mbconv_forward.1} parent=11 // pred_region
        _
      $region16: #{fused_mbconv_forward.1} parent=11 // pred_fallthru
        _
      // Predicated region
      $region17: #{fused_mbconv_forward.1} parent=11 // pred_check
        %p165 = pneg %p79
      $region18: #{fused_mbconv_forward.1} parent=11 // pred_check_branch
        %167 = sbr.rel (%p165) target = $region20
      $region19: #{fused_mbconv_forward.1} parent=11 // pred_region
        _
      $region20: #{fused_mbconv_forward.1} parent=11 // pred_fallthru
        _
      // Predicated region
      $region21: #{fused_mbconv_forward.1} parent=11 // pred_check
        %p168 = pneg %p100
      $region22: #{fused_mbconv_forward.1} parent=11 // pred_check_branch
        %170 = sbr.rel (%p168) target = $region24
      $region23: #{fused_mbconv_forward.1} parent=11 // pred_region
        _
      $region24: #{fused_mbconv_forward.1} parent=11 // pred_fallthru
        _
      // Predicated region
      $region25: #{fused_mbconv_forward.1} parent=11 // pred_check
        %p171 = pneg %p121
      $region26: #{fused_mbconv_forward.1} parent=11 // pred_check_branch
        %173 = sbr.rel (%p171) target = $region28
      $region27: #{fused_mbconv_forward.1} parent=11 // pred_region
        _
      $region28: #{fused_mbconv_forward.1} parent=11 // pred_fallthru
        _
    $region12: #{fused_mbconv_forward.1} parent=5 // pred_fallthru
      _
    %p174 = scmp.lt.s32.totalorder %s11, 4
    // Predicated region
    $region29: #{fused_mbconv_forward.1} parent=5 // pred_check
      %p175 = pneg %p174
    $region30: #{fused_mbconv_forward.1} parent=5 // pred_check_branch
      %177 = sbr.rel (%p175) target = $region32
    $region31: #{fused_mbconv_forward.1} parent=5 // pred_region
      // Predicated region
      $region33: #{fused_mbconv_forward.1} parent=31 // pred_check
        %p178 = pneg %p31
      $region34: #{fused_mbconv_forward.1} parent=31 // pred_check_branch
        %180 = sbr.rel (%p178) target = $region36
      $region35: #{fused_mbconv_forward.1} parent=31 // pred_region
        %s181 = smul.u32 2, %s11
        %p182 = scmp.lt.s32.totalorder %s181, 7
        %s183 = scalar_select %p182, %s181, 7
        %s184 = smul.addr %s183, 3
        %s185 = smul.addr %s184, 8
        %s186 = scalar_lea.vmem %s0, %s185
        %s187 = smul.u32 2, %s11
      $region36: #{fused_mbconv_forward.1} parent=31 // pred_fallthru
        _
    $region32: #{fused_mbconv_forward.1} parent=5 // pred_fallthru
      _
    %p188 = scmp.le.s32.totalorder 1, %s11
    %p189 = scmp.lt.s32.totalorder %s11, 5
    %p190 = pnand %p188, %p189
    %p191 = pneg %p190
    // Predicated region
    $region37: #{fused_mbconv_forward.1} parent=5 // pred_check
      _
    $region38: #{fused_mbconv_forward.1} parent=5 // pred_check_branch
      %193 = sbr.rel (%p190) target = $region40
    $region39: #{fused_mbconv_forward.1} parent=5 // pred_region
      %s194 = ssub.s32 %s11, 1
      %s195 = smul.u32 2, %s16
      %p196 = scmp.lt.s32.totalorder %s195, 7
      %s197 = scalar_select %p196, %s195, 7
      %s198 = smul.addr %s197, 3
      %s199 = smul.addr %s198, 8
      %s200 = scalar_lea.vmem %s0, %s199
      %p201 = pneg %p37
      %p202 = pneg %p34
      %p203 = pneg %p58
      %p204 = pneg %p55
      %p205 = pneg %p79
      %p206 = pneg %p76
      %p207 = pneg %p100
      %p208 = pneg %p97
      %p209 = pneg %p121
      %p210 = pneg %p118
      %p211 = pneg %p147
      %p212 = pneg %p144
      %s213 = smul.u32 2, %s16
      %p214 = scmp.lt.s32.totalorder %s213, 7
      %s215 = scalar_select %p214, %s213, 7
      %s216 = smul.addr %s215, 2
      %s217 = smul.addr %s216, 8
      %s218 = scalar_lea.vmem %s5, %s217
      %s219 = smul.u32 2, %s16
      %p220 = scmp.lt.s32.totalorder %s219, 7
      %s221 = scalar_select %p220, %s219, 7
      %s222 = smul.addr %s221, 3
      %s223 = smul.addr %s222, 8
      %s224 = scalar_lea.vmem %s0, %s223
      %s225 = smul.u32 2, %s16
      %s226 = smul.u32 2, %s16
      %p227 = scmp.lt.s32.totalorder %s226, 7
      %s228 = scalar_select %p227, %s226, 7
      %s229 = smul.addr %s228, 2
      %s230 = smul.addr %s229, 8
      %s231 = scalar_lea.vmem %s5, %s230
      %s232 = smul.u32 2, %s16
      %v233 = vld [vmem:[%s224] sm:$0xff]
      %v234 = vld [vmem:[%s224 + $0x8] sm:$0xff]
      %v235 = vld [vmem:[%s224 + $0x18] sm:$0xff]
      %v236 = vld [vmem:[%s224 + $0x20] sm:$0xff]
      %v237 = vld [vmem:[%s1] sm:$0xff]
      %v238 = vld [vmem:[%s1 + $0x8] sm:$0xff]
      %v239 = vld [vmem:[%s1 + $0x10] sm:$0xff]
      %v240 = vld [vmem:[%s1 + $0x18] sm:$0xff]
      %v241 = vld [vmem:[%s1 + $0x20] sm:$0xff]
      %v242 = vld [vmem:[%s1 + $0x28] sm:$0xff]
      %v243 = vld [vmem:[%s1 + $0x30] sm:$0xff]
      %v244 = vld [vmem:[%s1 + $0x38] sm:$0xff]
      %v245 = vld [vmem:[%s1 + $0x40] sm:$0xff]
      %v246 = vld [vmem:[%s1 + $0x48] sm:$0xff]
      %v247 = vld [vmem:[%s1 + $0x50] sm:$0xff]
      %v248 = vld [vmem:[%s1 + $0x58] sm:$0xff]
      %v249 = vld [vmem:[%s1 + $0x60] sm:$0xff]
      %v250 = vld [vmem:[%s1 + $0x68] sm:$0xff]
      %v251 = vld [vmem:[%s1 + $0x70] sm:$0xff]
      %v252 = vld [vmem:[%s1 + $0x78] sm:$0xff]
      %v253 = vld [vmem:[%s1 + $0x80] sm:$0xff]
      %v254 = vld [vmem:[%s1 + $0x88] sm:$0xff]
      %v255 = vld [vmem:[%s1 + $0x90] sm:$0xff]
      %v256 = vld [vmem:[%s1 + $0x98] sm:$0xff]
      %v257 = vld [vmem:[%s1 + $0xa0] sm:$0xff]
      %v258 = vld [vmem:[%s1 + $0xa8] sm:$0xff]
      %v259 = vld [vmem:[%s1 + $0xb0] sm:$0xff]
      %v260 = vld [vmem:[%s1 + $0xb8] sm:$0xff]
      %v261 = vld [vmem:[%s1 + $0xc0] sm:$0xff]
      %v262 = vld [vmem:[%s1 + $0xc8] sm:$0xff]
      %v263 = vld [vmem:[%s1 + $0xd0] sm:$0xff]
      %v264 = vld [vmem:[%s1 + $0xd8] sm:$0xff]
      %v265 = vld [vmem:[%s1 + $0xe0] sm:$0xff]
      %v266 = vld [vmem:[%s1 + $0xe8] sm:$0xff]
      %v267 = vld [vmem:[%s1 + $0xf0] sm:$0xff]
      %v268 = vld [vmem:[%s1 + $0xf8] sm:$0xff]
      %v269 = vld [vmem:[%s1 + $0x100] sm:$0xff]
      %v270 = vld [vmem:[%s1 + $0x108] sm:$0xff]
      %v271 = vld [vmem:[%s1 + $0x110] sm:$0xff]
      %v272 = vld [vmem:[%s1 + $0x118] sm:$0xff]
      %v273 = vld [vmem:[%s1 + $0x120] sm:$0xff]
      %v274 = vld [vmem:[%s1 + $0x128] sm:$0xff]
      %v275 = vld [vmem:[%s1 + $0x130] sm:$0xff]
      %v276 = vld [vmem:[%s1 + $0x138] sm:$0xff]
      %v277 = vld [vmem:[%s1 + $0x140] sm:$0xff]
      %v278 = vld [vmem:[%s1 + $0x148] sm:$0xff]
      %v279 = vld [vmem:[%s1 + $0x150] sm:$0xff]
      %v280 = vld [vmem:[%s1 + $0x158] sm:$0xff]
      %v281 = vld [vmem:[%s1 + $0x160] sm:$0xff]
      %v282 = vld [vmem:[%s1 + $0x168] sm:$0xff]
      %v283 = vld [vmem:[%s1 + $0x170] sm:$0xff]
      %v284 = vld [vmem:[%s1 + $0x178] sm:$0xff]
      %v285 = vld [vmem:[%s1 + $0x180] sm:$0xff]
      %v286 = vld [vmem:[%s1 + $0x188] sm:$0xff]
      %v287 = vld [vmem:[%s1 + $0x190] sm:$0xff]
      %v288 = vld [vmem:[%s1 + $0x198] sm:$0xff]
      %v289 = vld [vmem:[%s1 + $0x1a0] sm:$0xff]
      %v290 = vld [vmem:[%s1 + $0x1a8] sm:$0xff]
      %v291 = vld [vmem:[%s1 + $0x1b0] sm:$0xff]
      %v292 = vld [vmem:[%s1 + $0x1b8] sm:$0xff]
      %v293 = vld [vmem:[%s1 + $0x1c0] sm:$0xff]
      %v294 = vld [vmem:[%s1 + $0x1c8] sm:$0xff]
      %v295 = vld [vmem:[%s1 + $0x1d0] sm:$0xff]
      %v296 = vld [vmem:[%s1 + $0x1d8] sm:$0xff]
      %v297 = vld [vmem:[%s1 + $0x1e0] sm:$0xff]
      %v298 = vld [vmem:[%s1 + $0x1e8] sm:$0xff]
      %v299 = vld [vmem:[%s1 + $0x1f0] sm:$0xff]
      %v300 = vld [vmem:[%s1 + $0x1f8] sm:$0xff]
      %v301 = vld [vmem:[%s224 + $0x1] sm:$0xff]
      %v302 = vld [vmem:[%s224 + $0x9] sm:$0xff]
      %v303 = vld [vmem:[%s224 + $0x19] sm:$0xff]
      %v304 = vld [vmem:[%s224 + $0x21] sm:$0xff]
      %s305 = scalar_lea.vmem %s1, 512
      %v306 = vld [vmem:[%s305] sm:$0xff]
      %v307 = vld [vmem:[%s305 + $0x8] sm:$0xff]
      %v308 = vld [vmem:[%s305 + $0x10] sm:$0xff]
      %v309 = vld [vmem:[%s305 + $0x18] sm:$0xff]
      %v310 = vld [vmem:[%s305 + $0x20] sm:$0xff]
      %v311 = vld [vmem:[%s305 + $0x28] sm:$0xff]
      %v312 = vld [vmem:[%s305 + $0x30] sm:$0xff]
      %v313 = vld [vmem:[%s305 + $0x38] sm:$0xff]
      %v314 = vld [vmem:[%s305 + $0x40] sm:$0xff]
      %v315 = vld [vmem:[%s305 + $0x48] sm:$0xff]
      %v316 = vld [vmem:[%s305 + $0x50] sm:$0xff]
      %v317 = vld [vmem:[%s305 + $0x58] sm:$0xff]
      %v318 = vld [vmem:[%s305 + $0x60] sm:$0xff]
      %v319 = vld [vmem:[%s305 + $0x68] sm:$0xff]
      %v320 = vld [vmem:[%s305 + $0x70] sm:$0xff]
      %v321 = vld [vmem:[%s305 + $0x78] sm:$0xff]
      %v322 = vld [vmem:[%s305 + $0x80] sm:$0xff]
      %v323 = vld [vmem:[%s305 + $0x88] sm:$0xff]
      %v324 = vld [vmem:[%s305 + $0x90] sm:$0xff]
      %v325 = vld [vmem:[%s305 + $0x98] sm:$0xff]
      %v326 = vld [vmem:[%s305 + $0xa0] sm:$0xff]
      %v327 = vld [vmem:[%s305 + $0xa8] sm:$0xff]
      %v328 = vld [vmem:[%s305 + $0xb0] sm:$0xff]
      %v329 = vld [vmem:[%s305 + $0xb8] sm:$0xff]
      %v330 = vld [vmem:[%s305 + $0xc0] sm:$0xff]
      %v331 = vld [vmem:[%s305 + $0xc8] sm:$0xff]
      %v332 = vld [vmem:[%s305 + $0xd0] sm:$0xff]
      %v333 = vld [vmem:[%s305 + $0xd8] sm:$0xff]
      %v334 = vld [vmem:[%s305 + $0xe0] sm:$0xff]
      %v335 = vld [vmem:[%s305 + $0xe8] sm:$0xff]
      %v336 = vld [vmem:[%s305 + $0xf0] sm:$0xff]
      %v337 = vld [vmem:[%s305 + $0xf8] sm:$0xff]
      %v338 = vld [vmem:[%s305 + $0x100] sm:$0xff]
      %v339 = vld [vmem:[%s305 + $0x108] sm:$0xff]
      %v340 = vld [vmem:[%s305 + $0x110] sm:$0xff]
      %v341 = vld [vmem:[%s305 + $0x118] sm:$0xff]
      %v342 = vld [vmem:[%s305 + $0x120] sm:$0xff]
      %v343 = vld [vmem:[%s305 + $0x128] sm:$0xff]
      %v344 = vld [vmem:[%s305 + $0x130] sm:$0xff]
      %v345 = vld [vmem:[%s305 + $0x138] sm:$0xff]
      %v346 = vld [vmem:[%s305 + $0x140] sm:$0xff]
      %v347 = vld [vmem:[%s305 + $0x148] sm:$0xff]
      %v348 = vld [vmem:[%s305 + $0x150] sm:$0xff]
      %v349 = vld [vmem:[%s305 + $0x158] sm:$0xff]
      %v350 = vld [vmem:[%s305 + $0x160] sm:$0xff]
      %v351 = vld [vmem:[%s305 + $0x168] sm:$0xff]
      %v352 = vld [vmem:[%s305 + $0x170] sm:$0xff]
      %v353 = vld [vmem:[%s305 + $0x178] sm:$0xff]
      %v354 = vld [vmem:[%s305 + $0x180] sm:$0xff]
      %v355 = vld [vmem:[%s305 + $0x188] sm:$0xff]
      %v356 = vld [vmem:[%s305 + $0x190] sm:$0xff]
      %v357 = vld [vmem:[%s305 + $0x198] sm:$0xff]
      %v358 = vld [vmem:[%s305 + $0x1a0] sm:$0xff]
      %v359 = vld [vmem:[%s305 + $0x1a8] sm:$0xff]
      %v360 = vld [vmem:[%s305 + $0x1b0] sm:$0xff]
      %v361 = vld [vmem:[%s305 + $0x1b8] sm:$0xff]
      %v362 = vld [vmem:[%s305 + $0x1c0] sm:$0xff]
      %v363 = vld [vmem:[%s305 + $0x1c8] sm:$0xff]
      %v364 = vld [vmem:[%s305 + $0x1d0] sm:$0xff]
      %v365 = vld [vmem:[%s305 + $0x1d8] sm:$0xff]
      %v366 = vld [vmem:[%s305 + $0x1e0] sm:$0xff]
      %v367 = vld [vmem:[%s305 + $0x1e8] sm:$0xff]
      %v368 = vld [vmem:[%s305 + $0x1f0] sm:$0xff]
      %v369 = vld [vmem:[%s305 + $0x1f8] sm:$0xff]
      %370 = vmatprep.subr.mxu0 %v367
      %371 = vmatpush1.msra.mxu0 %v366
      %372 = vmatprep.subr.mxu0 %v363
      %373 = vmatpush1.msra.mxu0 %v362
      %374 = vmatprep.subr.mxu0 %v359
      %375 = vmatpush1.msra.mxu0 %v358
      %376 = vmatprep.subr.mxu0 %v355
      %377 = vmatpush1.msra.mxu0 %v354
      %378 = vmatprep.subr.mxu0 %v351
      %379 = vmatpush1.msra.mxu0 %v350
      %380 = vmatprep.subr.mxu0 %v347
      %381 = vmatpush1.msra.mxu0 %v346
      %382 = vmatprep.subr.mxu0 %v343
      %383 = vmatpush1.msra.mxu0 %v342
      %384 = vmatprep.subr.mxu0 %v339
      %385 = vmatpush1.msra.mxu0 %v338
      %386 = vmatprep.subr.mxu0 %v335
      %387 = vmatpush1.msra.mxu0 %v334
      %388 = vmatprep.subr.mxu0 %v331
      %389 = vmatpush1.msra.mxu0 %v330
      %390 = vmatprep.subr.mxu0 %v327
      %391 = vmatpush1.msra.mxu0 %v326
      %392 = vmatprep.subr.mxu0 %v323
      %393 = vmatpush1.msra.mxu0 %v322
      %394 = vmatprep.subr.mxu0 %v319
      %395 = vmatpush1.msra.mxu0 %v318
      %396 = vmatprep.subr.mxu0 %v315
      %397 = vmatpush1.msra.mxu0 %v314
      %398 = vmatprep.subr.mxu0 %v311
      %399 = vmatpush1.msra.mxu0 %v310
      %400 = vmatprep.subr.mxu0 %v307
      %401 = vmatpush1.msra.mxu0 %v306
      %402 = vmatprep.subr.mxu0 0.0
      %403 = vmatpush2.msra.mxu0 0.0
      %404 = vmatprep.subr.mxu0 0.0
      %405 = vmatpush2.msra.mxu0 0.0
      %406 = vmatprep.subr.mxu0 0.0
      %407 = vmatpush2.msra.mxu0 0.0
      %408 = vmatprep.subr.mxu0 0.0
      %409 = vmatpush2.msra.mxu0 0.0
      %410 = vmatprep.subr.mxu0 0.0
      %411 = vmatpush2.msra.mxu0 0.0
      %412 = vmatprep.subr.mxu0 0.0
      %413 = vmatpush2.msra.mxu0 0.0
      %414 = vmatprep.subr.mxu0 0.0
      %415 = vmatpush2.msra.mxu0 0.0
      %416 = vmatprep.subr.mxu0 0.0
      %417 = vmatpush2.msra.mxu0 0.0
      %418 = vmatprep.subr.mxu0 0.0
      %419 = vmatpush2.msra.mxu0 0.0
      %420 = vmatprep.subr.mxu0 0.0
      %421 = vmatpush2.msra.mxu0 0.0
      %422 = vmatprep.subr.mxu0 0.0
      %423 = vmatpush2.msra.mxu0 0.0
      %424 = vmatprep.subr.mxu0 0.0
      %425 = vmatpush2.msra.mxu0 0.0
      %426 = vmatprep.subr.mxu0 0.0
      %427 = vmatpush2.msra.mxu0 0.0
      %428 = vmatprep.subr.mxu0 0.0
      %429 = vmatpush2.msra.mxu0 0.0
      %430 = vmatprep.subr.mxu0 0.0
      %431 = vmatpush2.msra.mxu0 0.0
      %432 = vmatprep.subr.mxu0 0.0
      %433 = vmatpush2.msra.mxu0 0.0
      %434 = vmatprep.mubr.f32.mxu0 0.0
      %435 = vmatmul.mubr.f32.gmra.mxu0 %v301
      %v436 = vpop.f32.mrf.mxu0
      %v437 = vadd.f32 0.0, %v436
      %v438 = vpop.f32.mrf.mxu0
      %v439 = vadd.f32 0.0, %v438
      %440 = vmatprep.mubr.f32.mxu0 0.0
      %441 = vmatmul.mubr.f32.gmra.mxu0 %v302
      %v442 = vpop.f32.mrf.mxu0
      %v443 = vadd.f32 0.0, %v442
      %v444 = vpop.f32.mrf.mxu0
      %v445 = vadd.f32 0.0, %v444
      %446 = vmatprep.mubr.f32.mxu0 0.0
      %447 = vmatmul.mubr.f32.gmra.mxu0 %v303
      %v448 = vpop.f32.mrf.mxu0
      %v449 = vadd.f32 0.0, %v448
      %v450 = vpop.f32.mrf.mxu0
      %v451 = vadd.f32 0.0, %v450
      %452 = vmatprep.mubr.f32.mxu0 0.0
      %453 = vmatmul.mubr.f32.gmra.mxu0 %v304
      %v454 = vpop.f32.mrf.mxu0
      %v455 = vadd.f32 0.0, %v454
      %v456 = vpop.f32.mrf.mxu0
      %v457 = vadd.f32 0.0, %v456
      %458 = vdwg.mxu0
      %459 = vmatprep.subr.mxu0 %v369
      %460 = vmatpush1.msra.mxu0 %v368
      %461 = vmatprep.subr.mxu0 %v365
      %462 = vmatpush1.msra.mxu0 %v364
      %463 = vmatprep.subr.mxu0 %v361
      %464 = vmatpush1.msra.mxu0 %v360
      %465 = vmatprep.subr.mxu0 %v357
      %466 = vmatpush1.msra.mxu0 %v356
      %467 = vmatprep.subr.mxu0 %v353
      %468 = vmatpush1.msra.mxu0 %v352
      %469 = vmatprep.subr.mxu0 %v349
      %470 = vmatpush1.msra.mxu0 %v348
      %471 = vmatprep.subr.mxu0 %v345
      %472 = vmatpush1.msra.mxu0 %v344
      %473 = vmatprep.subr.mxu0 %v341
      %474 = vmatpush1.msra.mxu0 %v340
      %475 = vmatprep.subr.mxu0 %v337
      %476 = vmatpush1.msra.mxu0 %v336
      %477 = vmatprep.subr.mxu0 %v333
      %478 = vmatpush1.msra.mxu0 %v332
      %479 = vmatprep.subr.mxu0 %v329
      %480 = vmatpush1.msra.mxu0 %v328
      %481 = vmatprep.subr.mxu0 %v325
      %482 = vmatpush1.msra.mxu0 %v324
      %483 = vmatprep.subr.mxu0 %v321
      %484 = vmatpush1.msra.mxu0 %v320
      %485 = vmatprep.subr.mxu0 %v317
      %486 = vmatpush1.msra.mxu0 %v316
      %487 = vmatprep.subr.mxu0 %v313
      %488 = vmatpush1.msra.mxu0 %v312
      %489 = vmatprep.subr.mxu0 %v309
      %490 = vmatpush1.msra.mxu0 %v308
      %491 = vmatprep.subr.mxu0 0.0
      %492 = vmatpush2.msra.mxu0 0.0
      %493 = vmatprep.subr.mxu0 0.0
      %494 = vmatpush2.msra.mxu0 0.0
      %495 = vmatprep.subr.mxu0 0.0
      %496 = vmatpush2.msra.mxu0 0.0
      %497 = vmatprep.subr.mxu0 0.0
      %498 = vmatpush2.msra.mxu0 0.0
      %499 = vmatprep.subr.mxu0 0.0
      %500 = vmatpush2.msra.mxu0 0.0
      %501 = vmatprep.subr.mxu0 0.0
      %502 = vmatpush2.msra.mxu0 0.0
      %503 = vmatprep.subr.mxu0 0.0
      %504 = vmatpush2.msra.mxu0 0.0
      %505 = vmatprep.subr.mxu0 0.0
      %506 = vmatpush2.msra.mxu0 0.0
      %507 = vmatprep.subr.mxu0 0.0
      %508 = vmatpush2.msra.mxu0 0.0
      %509 = vmatprep.subr.mxu0 0.0
      %510 = vmatpush2.msra.mxu0 0.0
      %511 = vmatprep.subr.mxu0 0.0
      %512 = vmatpush2.msra.mxu0 0.0
      %513 = vmatprep.subr.mxu0 0.0
      %514 = vmatpush2.msra.mxu0 0.0
      %515 = vmatprep.subr.mxu0 0.0
      %516 = vmatpush2.msra.mxu0 0.0
      %517 = vmatprep.subr.mxu0 0.0
      %518 = vmatpush2.msra.mxu0 0.0
      %519 = vmatprep.subr.mxu0 0.0
      %520 = vmatpush2.msra.mxu0 0.0
      %521 = vmatprep.subr.mxu0 0.0
      %522 = vmatpush2.msra.mxu0 0.0
      %523 = vmatprep.mubr.f32.mxu0 0.0
      %524 = vmatmul.mubr.f32.gmra.mxu0 %v301
      %v525 = vpop.f32.mrf.mxu0
      %v526 = vadd.f32 0.0, %v525
      %v527 = vpop.f32.mrf.mxu0
      %v528 = vadd.f32 0.0, %v527
      %529 = vmatprep.mubr.f32.mxu0 0.0
      %530 = vmatmul.mubr.f32.gmra.mxu0 %v302
      %v531 = vpop.f32.mrf.mxu0
      %v532 = vadd.f32 0.0, %v531
      %v533 = vpop.f32.mrf.mxu0
      %v534 = vadd.f32 0.0, %v533
      %535 = vmatprep.mubr.f32.mxu0 0.0
      %536 = vmatmul.mubr.f32.gmra.mxu0 %v303
      %v537 = vpop.f32.mrf.mxu0
      %v538 = vadd.f32 0.0, %v537
      %v539 = vpop.f32.mrf.mxu0
      %v540 = vadd.f32 0.0, %v539
      %541 = vmatprep.mubr.f32.mxu0 0.0
      %542 = vmatmul.mubr.f32.gmra.mxu0 %v304
      %v543 = vpop.f32.mrf.mxu0
      %v544 = vadd.f32 0.0, %v543
      %v545 = vpop.f32.mrf.mxu0
      %v546 = vadd.f32 0.0, %v545
      %547 = vdwg.mxu0
      %548 = vmatprep.subr.mxu0 %v298
      %549 = vmatpush1.msra.mxu0 %v297
      %550 = vmatprep.subr.mxu0 %v294
      %551 = vmatpush1.msra.mxu0 %v293
      %552 = vmatprep.subr.mxu0 %v290
      %553 = vmatpush1.msra.mxu0 %v289
      %554 = vmatprep.subr.mxu0 %v286
      %555 = vmatpush1.msra.mxu0 %v285
      %556 = vmatprep.subr.mxu0 %v282
      %557 = vmatpush1.msra.mxu0 %v281
      %558 = vmatprep.subr.mxu0 %v278
      %559 = vmatpush1.msra.mxu0 %v277
      %560 = vmatprep.subr.mxu0 %v274
      %561 = vmatpush1.msra.mxu0 %v273
      %562 = vmatprep.subr.mxu0 %v270
      %563 = vmatpush1.msra.mxu0 %v269
      %564 = vmatprep.subr.mxu0 %v266
      %565 = vmatpush1.msra.mxu0 %v265
      %566 = vmatprep.subr.mxu0 %v262
      %567 = vmatpush1.msra.mxu0 %v261
      %568 = vmatprep.subr.mxu0 %v258
      %569 = vmatpush1.msra.mxu0 %v257
      %570 = vmatprep.subr.mxu0 %v254
      %571 = vmatpush1.msra.mxu0 %v253
      %572 = vmatprep.subr.mxu0 %v250
      %573 = vmatpush1.msra.mxu0 %v249
      %574 = vmatprep.subr.mxu0 %v246
      %575 = vmatpush1.msra.mxu0 %v245
      %576 = vmatprep.subr.mxu0 %v242
      %577 = vmatpush1.msra.mxu0 %v241
      %578 = vmatprep.subr.mxu0 %v238
      %579 = vmatpush1.msra.mxu0 %v237
      %580 = vmatprep.subr.mxu0 0.0
      %581 = vmatpush2.msra.mxu0 0.0
      %582 = vmatprep.subr.mxu0 0.0
      %583 = vmatpush2.msra.mxu0 0.0
      %584 = vmatprep.subr.mxu0 0.0
      %585 = vmatpush2.msra.mxu0 0.0
      %586 = vmatprep.subr.mxu0 0.0
      %587 = vmatpush2.msra.mxu0 0.0
      %588 = vmatprep.subr.mxu0 0.0
      %589 = vmatpush2.msra.mxu0 0.0
      %590 = vmatprep.subr.mxu0 0.0
      %591 = vmatpush2.msra.mxu0 0.0
      %592 = vmatprep.subr.mxu0 0.0
      %593 = vmatpush2.msra.mxu0 0.0
      %594 = vmatprep.subr.mxu0 0.0
      %595 = vmatpush2.msra.mxu0 0.0
      %596 = vmatprep.subr.mxu0 0.0
      %597 = vmatpush2.msra.mxu0 0.0
      %598 = vmatprep.subr.mxu0 0.0
      %599 = vmatpush2.msra.mxu0 0.0
      %600 = vmatprep.subr.mxu0 0.0
      %601 = vmatpush2.msra.mxu0 0.0
      %602 = vmatprep.subr.mxu0 0.0
      %603 = vmatpush2.msra.mxu0 0.0
      %604 = vmatprep.subr.mxu0 0.0
      %605 = vmatpush2.msra.mxu0 0.0
      %606 = vmatprep.subr.mxu0 0.0
      %607 = vmatpush2.msra.mxu0 0.0
      %608 = vmatprep.subr.mxu0 0.0
      %609 = vmatpush2.msra.mxu0 0.0
      %610 = vmatprep.subr.mxu0 0.0
      %611 = vmatpush2.msra.mxu0 0.0
      %612 = vmatprep.mubr.f32.mxu0 0.0
      %613 = vmatmul.mubr.f32.gmra.mxu0 %v233
      %v614 = vpop.f32.mrf.mxu0
      %v615 = vadd.f32 %v437, %v614
      %v616 = vpop.f32.mrf.mxu0
      %v617 = vadd.f32 %v439, %v616
      %618 = vmatprep.mubr.f32.mxu0 0.0
      %619 = vmatmul.mubr.f32.gmra.mxu0 %v234
      %v620 = vpop.f32.mrf.mxu0
      %v621 = vadd.f32 %v443, %v620
      %v622 = vpop.f32.mrf.mxu0
      %v623 = vadd.f32 %v445, %v622
      %624 = vmatprep.mubr.f32.mxu0 0.0
      %625 = vmatmul.mubr.f32.gmra.mxu0 %v235
      %v626 = vpop.f32.mrf.mxu0
      %v627 = vadd.f32 %v449, %v626
      %v628 = vpop.f32.mrf.mxu0
      %v629 = vadd.f32 %v451, %v628
      %630 = vmatprep.mubr.f32.mxu0 0.0
      %631 = vmatmul.mubr.f32.gmra.mxu0 %v236
      %v632 = vpop.f32.mrf.mxu0
      %v633 = vadd.f32 %v455, %v632
      %v634 = vpop.f32.mrf.mxu0
      %v635 = vadd.f32 %v457, %v634
      %636 = vdwg.mxu0
      %637 = vmatprep.subr.mxu0 %v300
      %638 = vmatpush1.msra.mxu0 %v299
      %639 = vmatprep.subr.mxu0 %v296
      %640 = vmatpush1.msra.mxu0 %v295
      %641 = vmatprep.subr.mxu0 %v292
      %642 = vmatpush1.msra.mxu0 %v291
      %643 = vmatprep.subr.mxu0 %v288
      %644 = vmatpush1.msra.mxu0 %v287
      %645 = vmatprep.subr.mxu0 %v284
      %646 = vmatpush1.msra.mxu0 %v283
      %647 = vmatprep.subr.mxu0 %v280
      %648 = vmatpush1.msra.mxu0 %v279
      %649 = vmatprep.subr.mxu0 %v276
      %650 = vmatpush1.msra.mxu0 %v275
      %651 = vmatprep.subr.mxu0 %v272
      %652 = vmatpush1.msra.mxu0 %v271
      %653 = vmatprep.subr.mxu0 %v268
      %654 = vmatpush1.msra.mxu0 %v267
      %655 = vmatprep.subr.mxu0 %v264
      %656 = vmatpush1.msra.mxu0 %v263
      %657 = vmatprep.subr.mxu0 %v260
      %658 = vmatpush1.msra.mxu0 %v259
      %659 = vmatprep.subr.mxu0 %v256
      %660 = vmatpush1.msra.mxu0 %v255
      %661 = vmatprep.subr.mxu0 %v252
      %662 = vmatpush1.msra.mxu0 %v251
      %663 = vmatprep.subr.mxu0 %v248
      %664 = vmatpush1.msra.mxu0 %v247
      %665 = vmatprep.subr.mxu0 %v244
      %666 = vmatpush1.msra.mxu0 %v243
      %667 = vmatprep.subr.mxu0 %v240
      %668 = vmatpush1.msra.mxu0 %v239
      %669 = vmatprep.subr.mxu0 0.0
      %670 = vmatpush2.msra.mxu0 0.0
      %671 = vmatprep.subr.mxu0 0.0
      %672 = vmatpush2.msra.mxu0 0.0
      %673 = vmatprep.subr.mxu0 0.0
      %674 = vmatpush2.msra.mxu0 0.0
      %675 = vmatprep.subr.mxu0 0.0
      %676 = vmatpush2.msra.mxu0 0.0
      %677 = vmatprep.subr.mxu0 0.0
      %678 = vmatpush2.msra.mxu0 0.0
      %679 = vmatprep.subr.mxu0 0.0
      %680 = vmatpush2.msra.mxu0 0.0
      %681 = vmatprep.subr.mxu0 0.0
      %682 = vmatpush2.msra.mxu0 0.0
      %683 = vmatprep.subr.mxu0 0.0
      %684 = vmatpush2.msra.mxu0 0.0
      %685 = vmatprep.subr.mxu0 0.0
      %686 = vmatpush2.msra.mxu0 0.0
      %687 = vmatprep.subr.mxu0 0.0
      %688 = vmatpush2.msra.mxu0 0.0
      %689 = vmatprep.subr.mxu0 0.0
      %690 = vmatpush2.msra.mxu0 0.0
      %691 = vmatprep.subr.mxu0 0.0
      %692 = vmatpush2.msra.mxu0 0.0
      %693 = vmatprep.subr.mxu0 0.0
      %694 = vmatpush2.msra.mxu0 0.0
      %695 = vmatprep.subr.mxu0 0.0
      %696 = vmatpush2.msra.mxu0 0.0
      %697 = vmatprep.subr.mxu0 0.0
      %698 = vmatpush2.msra.mxu0 0.0
      %699 = vmatprep.subr.mxu0 0.0
      %700 = vmatpush2.msra.mxu0 0.0
      %701 = vmatprep.mubr.f32.mxu0 0.0
      %702 = vmatmul.mubr.f32.gmra.mxu0 %v233
      %v703 = vpop.f32.mrf.mxu0
      %v704 = vadd.f32 %v526, %v703
      %v705 = vpop.f32.mrf.mxu0
      %v706 = vadd.f32 %v528, %v705
      %707 = vmatprep.mubr.f32.mxu0 0.0
      %708 = vmatmul.mubr.f32.gmra.mxu0 %v234
      %v709 = vpop.f32.mrf.mxu0
      %v710 = vadd.f32 %v532, %v709
      %v711 = vpop.f32.mrf.mxu0
      %v712 = vadd.f32 %v534, %v711
      %713 = vmatprep.mubr.f32.mxu0 0.0
      %714 = vmatmul.mubr.f32.gmra.mxu0 %v235
      %v715 = vpop.f32.mrf.mxu0
      %v716 = vadd.f32 %v538, %v715
      %v717 = vpop.f32.mrf.mxu0
      %v718 = vadd.f32 %v540, %v717
      %719 = vmatprep.mubr.f32.mxu0 0.0
      %720 = vmatmul.mubr.f32.gmra.mxu0 %v236
      %v721 = vpop.f32.mrf.mxu0
      %v722 = vadd.f32 %v544, %v721
      %v723 = vpop.f32.mrf.mxu0
      %v724 = vadd.f32 %v546, %v723
      %725 = vdwg.mxu0
      %v726 = vld [vmem:[%s224 + $0x2] sm:$0xff]
      %v727 = vld [vmem:[%s224 + $0xa] sm:$0xff]
      %v728 = vld [vmem:[%s224 + $0x1a] sm:$0xff]
      %v729 = vld [vmem:[%s224 + $0x22] sm:$0xff]
      %s730 = scalar_lea.vmem %s1, 1024
      %v731 = vld [vmem:[%s730] sm:$0xff]
      %v732 = vld [vmem:[%s730 + $0x8] sm:$0xff]
      %v733 = vld [vmem:[%s730 + $0x10] sm:$0xff]
      %v734 = vld [vmem:[%s730 + $0x18] sm:$0xff]
      %v735 = vld [vmem:[%s730 + $0x20] sm:$0xff]
      %v736 = vld [vmem:[%s730 + $0x28] sm:$0xff]
      %v737 = vld [vmem:[%s730 + $0x30] sm:$0xff]
      %v738 = vld [vmem:[%s730 + $0x38] sm:$0xff]
      %v739 = vld [vmem:[%s730 + $0x40] sm:$0xff]
      %v740 = vld [vmem:[%s730 + $0x48] sm:$0xff]
      %v741 = vld [vmem:[%s730 + $0x50] sm:$0xff]
      %v742 = vld [vmem:[%s730 + $0x58] sm:$0xff]
      %v743 = vld [vmem:[%s730 + $0x60] sm:$0xff]
      %v744 = vld [vmem:[%s730 + $0x68] sm:$0xff]
      %v745 = vld [vmem:[%s730 + $0x70] sm:$0xff]
      %v746 = vld [vmem:[%s730 + $0x78] sm:$0xff]
      %v747 = vld [vmem:[%s730 + $0x80] sm:$0xff]
      %v748 = vld [vmem:[%s730 + $0x88] sm:$0xff]
      %v749 = vld [vmem:[%s730 + $0x90] sm:$0xff]
      %v750 = vld [vmem:[%s730 + $0x98] sm:$0xff]
      %v751 = vld [vmem:[%s730 + $0xa0] sm:$0xff]
      %v752 = vld [vmem:[%s730 + $0xa8] sm:$0xff]
      %v753 = vld [vmem:[%s730 + $0xb0] sm:$0xff]
      %v754 = vld [vmem:[%s730 + $0xb8] sm:$0xff]
      %v755 = vld [vmem:[%s730 + $0xc0] sm:$0xff]
      %v756 = vld [vmem:[%s730 + $0xc8] sm:$0xff]
      %v757 = vld [vmem:[%s730 + $0xd0] sm:$0xff]
      %v758 = vld [vmem:[%s730 + $0xd8] sm:$0xff]
      %v759 = vld [vmem:[%s730 + $0xe0] sm:$0xff]
      %v760 = vld [vmem:[%s730 + $0xe8] sm:$0xff]
      %v761 = vld [vmem:[%s730 + $0xf0] sm:$0xff]
      %v762 = vld [vmem:[%s730 + $0xf8] sm:$0xff]
      %v763 = vld [vmem:[%s730 + $0x100] sm:$0xff]
      %v764 = vld [vmem:[%s730 + $0x108] sm:$0xff]
      %v765 = vld [vmem:[%s730 + $0x110] sm:$0xff]
      %v766 = vld [vmem:[%s730 + $0x118] sm:$0xff]
      %v767 = vld [vmem:[%s730 + $0x120] sm:$0xff]
      %v768 = vld [vmem:[%s730 + $0x128] sm:$0xff]
      %v769 = vld [vmem:[%s730 + $0x130] sm:$0xff]
      %v770 = vld [vmem:[%s730 + $0x138] sm:$0xff]
      %v771 = vld [vmem:[%s730 + $0x140] sm:$0xff]
      %v772 = vld [vmem:[%s730 + $0x148] sm:$0xff]
      %v773 = vld [vmem:[%s730 + $0x150] sm:$0xff]
      %v774 = vld [vmem:[%s730 + $0x158] sm:$0xff]
      %v775 = vld [vmem:[%s730 + $0x160] sm:$0xff]
      %v776 = vld [vmem:[%s730 + $0x168] sm:$0xff]
      %v777 = vld [vmem:[%s730 + $0x170] sm:$0xff]
      %v778 = vld [vmem:[%s730 + $0x178] sm:$0xff]
      %v779 = vld [vmem:[%s730 + $0x180] sm:$0xff]
      %v780 = vld [vmem:[%s730 + $0x188] sm:$0xff]
      %v781 = vld [vmem:[%s730 + $0x190] sm:$0xff]
      %v782 = vld [vmem:[%s730 + $0x198] sm:$0xff]
      %v783 = vld [vmem:[%s730 + $0x1a0] sm:$0xff]
      %v784 = vld [vmem:[%s730 + $0x1a8] sm:$0xff]
      %v785 = vld [vmem:[%s730 + $0x1b0] sm:$0xff]
      %v786 = vld [vmem:[%s730 + $0x1b8] sm:$0xff]
      %v787 = vld [vmem:[%s730 + $0x1c0] sm:$0xff]
      %v788 = vld [vmem:[%s730 + $0x1c8] sm:$0xff]
      %v789 = vld [vmem:[%s730 + $0x1d0] sm:$0xff]
      %v790 = vld [vmem:[%s730 + $0x1d8] sm:$0xff]
      %v791 = vld [vmem:[%s730 + $0x1e0] sm:$0xff]
      %v792 = vld [vmem:[%s730 + $0x1e8] sm:$0xff]
      %v793 = vld [vmem:[%s730 + $0x1f0] sm:$0xff]
      %v794 = vld [vmem:[%s730 + $0x1f8] sm:$0xff]
      %795 = vmatprep.subr.mxu0 %v792
      %796 = vmatpush1.msra.mxu0 %v791
      %797 = vmatprep.subr.mxu0 %v788
      %798 = vmatpush1.msra.mxu0 %v787
      %799 = vmatprep.subr.mxu0 %v784
      %800 = vmatpush1.msra.mxu0 %v783
      %801 = vmatprep.subr.mxu0 %v780
      %802 = vmatpush1.msra.mxu0 %v779
      %803 = vmatprep.subr.mxu0 %v776
      %804 = vmatpush1.msra.mxu0 %v775
      %805 = vmatprep.subr.mxu0 %v772
      %806 = vmatpush1.msra.mxu0 %v771
      %807 = vmatprep.subr.mxu0 %v768
      %808 = vmatpush1.msra.mxu0 %v767
      %809 = vmatprep.subr.mxu0 %v764
      %810 = vmatpush1.msra.mxu0 %v763
      %811 = vmatprep.subr.mxu0 %v760
      %812 = vmatpush1.msra.mxu0 %v759
      %813 = vmatprep.subr.mxu0 %v756
      %814 = vmatpush1.msra.mxu0 %v755
      %815 = vmatprep.subr.mxu0 %v752
      %816 = vmatpush1.msra.mxu0 %v751
      %817 = vmatprep.subr.mxu0 %v748
      %818 = vmatpush1.msra.mxu0 %v747
      %819 = vmatprep.subr.mxu0 %v744
      %820 = vmatpush1.msra.mxu0 %v743
      %821 = vmatprep.subr.mxu0 %v740
      %822 = vmatpush1.msra.mxu0 %v739
      %823 = vmatprep.subr.mxu0 %v736
      %824 = vmatpush1.msra.mxu0 %v735
      %825 = vmatprep.subr.mxu0 %v732
      %826 = vmatpush1.msra.mxu0 %v731
      %827 = vmatprep.subr.mxu0 0.0
      %828 = vmatpush2.msra.mxu0 0.0
      %829 = vmatprep.subr.mxu0 0.0
      %830 = vmatpush2.msra.mxu0 0.0
      %831 = vmatprep.subr.mxu0 0.0
      %832 = vmatpush2.msra.mxu0 0.0
      %833 = vmatprep.subr.mxu0 0.0
      %834 = vmatpush2.msra.mxu0 0.0
      %835 = vmatprep.subr.mxu0 0.0
      %836 = vmatpush2.msra.mxu0 0.0
      %837 = vmatprep.subr.mxu0 0.0
      %838 = vmatpush2.msra.mxu0 0.0
      %839 = vmatprep.subr.mxu0 0.0
      %840 = vmatpush2.msra.mxu0 0.0
      %841 = vmatprep.subr.mxu0 0.0
      %842 = vmatpush2.msra.mxu0 0.0
      %843 = vmatprep.subr.mxu0 0.0
      %844 = vmatpush2.msra.mxu0 0.0
      %845 = vmatprep.subr.mxu0 0.0
      %846 = vmatpush2.msra.mxu0 0.0
      %847 = vmatprep.subr.mxu0 0.0
      %848 = vmatpush2.msra.mxu0 0.0
      %849 = vmatprep.subr.mxu0 0.0
      %850 = vmatpush2.msra.mxu0 0.0
      %851 = vmatprep.subr.mxu0 0.0
      %852 = vmatpush2.msra.mxu0 0.0
      %853 = vmatprep.subr.mxu0 0.0
      %854 = vmatpush2.msra.mxu0 0.0
      %855 = vmatprep.subr.mxu0 0.0
      %856 = vmatpush2.msra.mxu0 0.0
      %857 = vmatprep.subr.mxu0 0.0
      %858 = vmatpush2.msra.mxu0 0.0
      %859 = vmatprep.mubr.f32.mxu0 0.0
      %860 = vmatmul.mubr.f32.gmra.mxu0 %v726
      %v861 = vpop.f32.mrf.mxu0
      %v862 = vadd.f32 0.0, %v861
      %v863 = vpop.f32.mrf.mxu0
      %v864 = vadd.f32 0.0, %v863
      %865 = vmatprep.mubr.f32.mxu0 0.0
      %866 = vmatmul.mubr.f32.gmra.mxu0 %v727
      %v867 = vpop.f32.mrf.mxu0
      %v868 = vadd.f32 0.0, %v867
      %v869 = vpop.f32.mrf.mxu0
      %v870 = vadd.f32 0.0, %v869
      %871 = vmatprep.mubr.f32.mxu0 0.0
      %872 = vmatmul.mubr.f32.gmra.mxu0 %v728
      %v873 = vpop.f32.mrf.mxu0
      %v874 = vadd.f32 0.0, %v873
      %v875 = vpop.f32.mrf.mxu0
      %v876 = vadd.f32 0.0, %v875
      %877 = vmatprep.mubr.f32.mxu0 0.0
      %878 = vmatmul.mubr.f32.gmra.mxu0 %v729
      %v879 = vpop.f32.mrf.mxu0
      %v880 = vadd.f32 0.0, %v879
      %v881 = vpop.f32.mrf.mxu0
      %v882 = vadd.f32 0.0, %v881
      %883 = vdwg.mxu0
      %884 = vmatprep.subr.mxu0 %v794
      %885 = vmatpush1.msra.mxu0 %v793
      %886 = vmatprep.subr.mxu0 %v790
      %887 = vmatpush1.msra.mxu0 %v789
      %888 = vmatprep.subr.mxu0 %v786
      %889 = vmatpush1.msra.mxu0 %v785
      %890 = vmatprep.subr.mxu0 %v782
      %891 = vmatpush1.msra.mxu0 %v781
      %892 = vmatprep.subr.mxu0 %v778
      %893 = vmatpush1.msra.mxu0 %v777
      %894 = vmatprep.subr.mxu0 %v774
      %895 = vmatpush1.msra.mxu0 %v773
      %896 = vmatprep.subr.mxu0 %v770
      %897 = vmatpush1.msra.mxu0 %v769
      %898 = vmatprep.subr.mxu0 %v766
      %899 = vmatpush1.msra.mxu0 %v765
      %900 = vmatprep.subr.mxu0 %v762
      %901 = vmatpush1.msra.mxu0 %v761
      %902 = vmatprep.subr.mxu0 %v758
      %903 = vmatpush1.msra.mxu0 %v757
      %904 = vmatprep.subr.mxu0 %v754
      %905 = vmatpush1.msra.mxu0 %v753
      %906 = vmatprep.subr.mxu0 %v750
      %907 = vmatpush1.msra.mxu0 %v749
      %908 = vmatprep.subr.mxu0 %v746
      %909 = vmatpush1.msra.mxu0 %v745
      %910 = vmatprep.subr.mxu0 %v742
      %911 = vmatpush1.msra.mxu0 %v741
      %912 = vmatprep.subr.mxu0 %v738
      %913 = vmatpush1.msra.mxu0 %v737
      %914 = vmatprep.subr.mxu0 %v734
      %915 = vmatpush1.msra.mxu0 %v733
      %916 = vmatprep.subr.mxu0 0.0
      %917 = vmatpush2.msra.mxu0 0.0
      %918 = vmatprep.subr.mxu0 0.0
      %919 = vmatpush2.msra.mxu0 0.0
      %920 = vmatprep.subr.mxu0 0.0
      %921 = vmatpush2.msra.mxu0 0.0
      %922 = vmatprep.subr.mxu0 0.0
      %923 = vmatpush2.msra.mxu0 0.0
      %924 = vmatprep.subr.mxu0 0.0
      %925 = vmatpush2.msra.mxu0 0.0
      %926 = vmatprep.subr.mxu0 0.0
      %927 = vmatpush2.msra.mxu0 0.0
      %928 = vmatprep.subr.mxu0 0.0
      %929 = vmatpush2.msra.mxu0 0.0
      %930 = vmatprep.subr.mxu0 0.0
      %931 = vmatpush2.msra.mxu0 0.0
      %932 = vmatprep.subr.mxu0 0.0
      %933 = vmatpush2.msra.mxu0 0.0
      %934 = vmatprep.subr.mxu0 0.0
      %935 = vmatpush2.msra.mxu0 0.0
      %936 = vmatprep.subr.mxu0 0.0
      %937 = vmatpush2.msra.mxu0 0.0
      %938 = vmatprep.subr.mxu0 0.0
      %939 = vmatpush2.msra.mxu0 0.0
      %940 = vmatprep.subr.mxu0 0.0
      %941 = vmatpush2.msra.mxu0 0.0
      %942 = vmatprep.subr.mxu0 0.0
      %943 = vmatpush2.msra.mxu0 0.0
      %944 = vmatprep.subr.mxu0 0.0
      %945 = vmatpush2.msra.mxu0 0.0
      %946 = vmatprep.subr.mxu0 0.0
      %947 = vmatpush2.msra.mxu0 0.0
      %948 = vmatprep.mubr.f32.mxu0 0.0
      %949 = vmatmul.mubr.f32.gmra.mxu0 %v726
      %v950 = vpop.f32.mrf.mxu0
      %v951 = vadd.f32 0.0, %v950
      %v952 = vpop.f32.mrf.mxu0
      %v953 = vadd.f32 0.0, %v952
      %954 = vmatprep.mubr.f32.mxu0 0.0
      %955 = vmatmul.mubr.f32.gmra.mxu0 %v727
      %v956 = vpop.f32.mrf.mxu0
      %v957 = vadd.f32 0.0, %v956
      %v958 = vpop.f32.mrf.mxu0
      %v959 = vadd.f32 0.0, %v958
      %960 = vmatprep.mubr.f32.mxu0 0.0
      %961 = vmatmul.mubr.f32.gmra.mxu0 %v728
      %v962 = vpop.f32.mrf.mxu0
      %v963 = vadd.f32 0.0, %v962
      %v964 = vpop.f32.mrf.mxu0
      %v965 = vadd.f32 0.0, %v964
      %966 = vmatprep.mubr.f32.mxu0 0.0
      %967 = vmatmul.mubr.f32.gmra.mxu0 %v729
      %v968 = vpop.f32.mrf.mxu0
      %v969 = vadd.f32 0.0, %v968
      %v970 = vpop.f32.mrf.mxu0
      %v971 = vadd.f32 0.0, %v970
      %972 = vdwg.mxu0
      %v973 = vadd.f32 %v615, %v862
      %v974 = vadd.f32 %v617, %v864
      %v975 = vadd.f32 %v704, %v951
      %v976 = vadd.f32 %v706, %v953
      %v977 = vadd.f32 %v621, %v868
      %v978 = vadd.f32 %v623, %v870
      %v979 = vadd.f32 %v710, %v957
      %v980 = vadd.f32 %v712, %v959
      %v981 = vadd.f32 %v627, %v874
      %v982 = vadd.f32 %v629, %v876
      %v983 = vadd.f32 %v716, %v963
      %v984 = vadd.f32 %v718, %v965
      %v985 = vadd.f32 %v633, %v880
      %v986 = vadd.f32 %v635, %v882
      %v987 = vadd.f32 %v722, %v969
      %v988 = vadd.f32 %v724, %v971
      %v989 = vld [vmem:[%s2] sm:$0xf]
      %v991 = vlaneseq
      %v992 = vshrl.u32 %v991, 7
      %v993 = vsub.s32 0, %v992
      %v994 = vrot.slane %v989, %v993
      %v995 = vlaneseq
      %v996 = vshrl.u32 %v995, 7
      %v997 = vsub.s32 1, %v996
      %v998 = vrot.slane %v989, %v997
      %v999 = vlaneseq
      %v1000 = vshrl.u32 %v999, 7
      %v1001 = vsub.s32 2, %v1000
      %v1002 = vrot.slane %v989, %v1001
      %v1003 = vlaneseq
      %v1004 = vshrl.u32 %v1003, 7
      %v1005 = vsub.s32 3, %v1004
      %v1006 = vrot.slane %v989, %v1005
      %v1011 = vadd.f32 %v973, %v994
      %v1012 = vadd.f32 %v974, %v998
      %v1013 = vadd.f32 %v975, %v1002
      %v1014 = vadd.f32 %v976, %v1006
      %v1015 = vadd.f32 %v977, %v994
      %v1016 = vadd.f32 %v978, %v998
      %v1017 = vadd.f32 %v979, %v1002
      %v1018 = vadd.f32 %v980, %v1006
      %v1019 = vadd.f32 %v981, %v994
      %v1020 = vadd.f32 %v982, %v998
      %v1021 = vadd.f32 %v983, %v1002
      %v1022 = vadd.f32 %v984, %v1006
      %v1023 = vadd.f32 %v985, %v994
      %v1024 = vadd.f32 %v986, %v998
      %v1025 = vadd.f32 %v987, %v1002
      %v1026 = vadd.f32 %v988, %v1006
      %v1027 = vxor.u32 %v1011, 2147483648
      %v1028 = vxor.u32 %v1012, 2147483648
      %v1029 = vxor.u32 %v1013, 2147483648
      %v1030 = vxor.u32 %v1014, 2147483648
      %v1031 = vxor.u32 %v1015, 2147483648
      %v1032 = vxor.u32 %v1016, 2147483648
      %v1033 = vxor.u32 %v1017, 2147483648
      %v1034 = vxor.u32 %v1018, 2147483648
      %v1035 = vxor.u32 %v1019, 2147483648
      %v1036 = vxor.u32 %v1020, 2147483648
      %v1037 = vxor.u32 %v1021, 2147483648
      %v1038 = vxor.u32 %v1022, 2147483648
      %v1039 = vxor.u32 %v1023, 2147483648
      %v1040 = vxor.u32 %v1024, 2147483648
      %v1041 = vxor.u32 %v1025, 2147483648
      %v1042 = vxor.u32 %v1026, 2147483648
      %v1043 = vmul.f32 %v1027, 1.442695
      %v1044 = vpow.pop %v1043
      %v1045 = vmul.f32 %v1028, 1.442695
      %v1046 = vpow.pop %v1045
      %v1047 = vmul.f32 %v1029, 1.442695
      %v1048 = vpow.pop %v1047
      %v1049 = vmul.f32 %v1030, 1.442695
      %v1050 = vpow.pop %v1049
      %v1051 = vmul.f32 %v1031, 1.442695
      %v1052 = vpow.pop %v1051
      %v1053 = vmul.f32 %v1032, 1.442695
      %v1054 = vpow.pop %v1053
      %v1055 = vmul.f32 %v1033, 1.442695
      %v1056 = vpow.pop %v1055
      %v1057 = vmul.f32 %v1034, 1.442695
      %v1058 = vpow.pop %v1057
      %v1059 = vmul.f32 %v1035, 1.442695
      %v1060 = vpow.pop %v1059
      %v1061 = vmul.f32 %v1036, 1.442695
      %v1062 = vpow.pop %v1061
      %v1063 = vmul.f32 %v1037, 1.442695
      %v1064 = vpow.pop %v1063
      %v1065 = vmul.f32 %v1038, 1.442695
      %v1066 = vpow.pop %v1065
      %v1067 = vmul.f32 %v1039, 1.442695
      %v1068 = vpow.pop %v1067
      %v1069 = vmul.f32 %v1040, 1.442695
      %v1070 = vpow.pop %v1069
      %v1071 = vmul.f32 %v1041, 1.442695
      %v1072 = vpow.pop %v1071
      %v1073 = vmul.f32 %v1042, 1.442695
      %v1074 = vpow.pop %v1073
      %v1075 = vadd.f32 %v1044, 1.0
      %v1076 = vadd.f32 %v1046, 1.0
      %v1077 = vadd.f32 %v1048, 1.0
      %v1078 = vadd.f32 %v1050, 1.0
      %v1079 = vadd.f32 %v1052, 1.0
      %v1080 = vadd.f32 %v1054, 1.0
      %v1081 = vadd.f32 %v1056, 1.0
      %v1082 = vadd.f32 %v1058, 1.0
      %v1083 = vadd.f32 %v1060, 1.0
      %v1084 = vadd.f32 %v1062, 1.0
      %v1085 = vadd.f32 %v1064, 1.0
      %v1086 = vadd.f32 %v1066, 1.0
      %v1087 = vadd.f32 %v1068, 1.0
      %v1088 = vadd.f32 %v1070, 1.0
      %v1089 = vadd.f32 %v1072, 1.0
      %v1090 = vadd.f32 %v1074, 1.0
      %v1091 = vrcp.pop %v1075
      %v1092 = vmul.f32 1.0, %v1091
      %v1093 = vrcp.pop %v1076
      %v1094 = vmul.f32 1.0, %v1093
      %v1095 = vrcp.pop %v1077
      %v1096 = vmul.f32 1.0, %v1095
      %v1097 = vrcp.pop %v1078
      %v1098 = vmul.f32 1.0, %v1097
      %v1099 = vrcp.pop %v1079
      %v1100 = vmul.f32 1.0, %v1099
      %v1101 = vrcp.pop %v1080
      %v1102 = vmul.f32 1.0, %v1101
      %v1103 = vrcp.pop %v1081
      %v1104 = vmul.f32 1.0, %v1103
      %v1105 = vrcp.pop %v1082
      %v1106 = vmul.f32 1.0, %v1105
      %v1107 = vrcp.pop %v1083
      %v1108 = vmul.f32 1.0, %v1107
      %v1109 = vrcp.pop %v1084
      %v1110 = vmul.f32 1.0, %v1109
      %v1111 = vrcp.pop %v1085
      %v1112 = vmul.f32 1.0, %v1111
      %v1113 = vrcp.pop %v1086
      %v1114 = vmul.f32 1.0, %v1113
      %v1115 = vrcp.pop %v1087
      %v1116 = vmul.f32 1.0, %v1115
      %v1117 = vrcp.pop %v1088
      %v1118 = vmul.f32 1.0, %v1117
      %v1119 = vrcp.pop %v1089
      %v1120 = vmul.f32 1.0, %v1119
      %v1121 = vrcp.pop %v1090
      %v1122 = vmul.f32 1.0, %v1121
      %v1123 = vmul.f32 %v1011, %v1092
      %v1124 = vmul.f32 %v1012, %v1094
      %v1125 = vmul.f32 %v1013, %v1096
      %v1126 = vmul.f32 %v1014, %v1098
      %v1127 = vmul.f32 %v1015, %v1100
      %v1128 = vmul.f32 %v1016, %v1102
      %v1129 = vmul.f32 %v1017, %v1104
      %v1130 = vmul.f32 %v1018, %v1106
      %v1131 = vmul.f32 %v1019, %v1108
      %v1132 = vmul.f32 %v1020, %v1110
      %v1133 = vmul.f32 %v1021, %v1112
      %v1134 = vmul.f32 %v1022, %v1114
      %v1135 = vmul.f32 %v1023, %v1116
      %v1136 = vmul.f32 %v1024, %v1118
      %v1137 = vmul.f32 %v1025, %v1120
      %v1138 = vmul.f32 %v1026, %v1122
      %v1139 = vld [vmem:[%s3] sm:$0xff]
      %v1140 = vld [vmem:[%s3 + $0x8] sm:$0xff]
      %v1141 = vld [vmem:[%s3 + $0x10] sm:$0xff]
      %v1142 = vld [vmem:[%s3 + $0x18] sm:$0xff]
      %v1143 = vld [vmem:[%s3 + $0x20] sm:$0xff]
      %v1144 = vld [vmem:[%s3 + $0x28] sm:$0xff]
      %v1145 = vld [vmem:[%s3 + $0x30] sm:$0xff]
      %v1146 = vld [vmem:[%s3 + $0x38] sm:$0xff]
      %v1147 = vld [vmem:[%s3 + $0x40] sm:$0xff]
      %v1148 = vld [vmem:[%s3 + $0x48] sm:$0xff]
      %v1149 = vld [vmem:[%s3 + $0x50] sm:$0xff]
      %v1150 = vld [vmem:[%s3 + $0x58] sm:$0xff]
      %v1151 = vld [vmem:[%s3 + $0x60] sm:$0xff]
      %v1152 = vld [vmem:[%s3 + $0x68] sm:$0xff]
      %v1153 = vld [vmem:[%s3 + $0x70] sm:$0xff]
      %v1154 = vld [vmem:[%s3 + $0x78] sm:$0xff]
      %v1155 = vld [vmem:[%s3 + $0x80] sm:$0xff]
      %v1156 = vld [vmem:[%s3 + $0x88] sm:$0xff]
      %v1157 = vld [vmem:[%s3 + $0x90] sm:$0xff]
      %v1158 = vld [vmem:[%s3 + $0x98] sm:$0xff]
      %v1159 = vld [vmem:[%s3 + $0xa0] sm:$0xff]
      %v1160 = vld [vmem:[%s3 + $0xa8] sm:$0xff]
      %v1161 = vld [vmem:[%s3 + $0xb0] sm:$0xff]
      %v1162 = vld [vmem:[%s3 + $0xb8] sm:$0xff]
      %v1163 = vld [vmem:[%s3 + $0xc0] sm:$0xff]
      %v1164 = vld [vmem:[%s3 + $0xc8] sm:$0xff]
      %v1165 = vld [vmem:[%s3 + $0xd0] sm:$0xff]
      %v1166 = vld [vmem:[%s3 + $0xd8] sm:$0xff]
      %v1167 = vld [vmem:[%s3 + $0xe0] sm:$0xff]
      %v1168 = vld [vmem:[%s3 + $0xe8] sm:$0xff]
      %v1169 = vld [vmem:[%s3 + $0xf0] sm:$0xff]
      %v1170 = vld [vmem:[%s3 + $0xf8] sm:$0xff]
      %v1171 = vld [vmem:[%s3 + $0x100] sm:$0xff]
      %v1172 = vld [vmem:[%s3 + $0x108] sm:$0xff]
      %v1173 = vld [vmem:[%s3 + $0x110] sm:$0xff]
      %v1174 = vld [vmem:[%s3 + $0x118] sm:$0xff]
      %v1175 = vld [vmem:[%s3 + $0x120] sm:$0xff]
      %v1176 = vld [vmem:[%s3 + $0x128] sm:$0xff]
      %v1177 = vld [vmem:[%s3 + $0x130] sm:$0xff]
      %v1178 = vld [vmem:[%s3 + $0x138] sm:$0xff]
      %v1179 = vld [vmem:[%s3 + $0x140] sm:$0xff]
      %v1180 = vld [vmem:[%s3 + $0x148] sm:$0xff]
      %v1181 = vld [vmem:[%s3 + $0x150] sm:$0xff]
      %v1182 = vld [vmem:[%s3 + $0x158] sm:$0xff]
      %v1183 = vld [vmem:[%s3 + $0x160] sm:$0xff]
      %v1184 = vld [vmem:[%s3 + $0x168] sm:$0xff]
      %v1185 = vld [vmem:[%s3 + $0x170] sm:$0xff]
      %v1186 = vld [vmem:[%s3 + $0x178] sm:$0xff]
      %v1187 = vld [vmem:[%s3 + $0x180] sm:$0xff]
      %v1188 = vld [vmem:[%s3 + $0x188] sm:$0xff]
      %v1189 = vld [vmem:[%s3 + $0x190] sm:$0xff]
      %v1190 = vld [vmem:[%s3 + $0x198] sm:$0xff]
      %v1191 = vld [vmem:[%s3 + $0x1a0] sm:$0xff]
      %v1192 = vld [vmem:[%s3 + $0x1a8] sm:$0xff]
      %v1193 = vld [vmem:[%s3 + $0x1b0] sm:$0xff]
      %v1194 = vld [vmem:[%s3 + $0x1b8] sm:$0xff]
      %v1195 = vld [vmem:[%s3 + $0x1c0] sm:$0xff]
      %v1196 = vld [vmem:[%s3 + $0x1c8] sm:$0xff]
      %v1197 = vld [vmem:[%s3 + $0x1d0] sm:$0xff]
      %v1198 = vld [vmem:[%s3 + $0x1d8] sm:$0xff]
      %v1199 = vld [vmem:[%s3 + $0x1e0] sm:$0xff]
      %v1200 = vld [vmem:[%s3 + $0x1e8] sm:$0xff]
      %v1201 = vld [vmem:[%s3 + $0x1f0] sm:$0xff]
      %v1202 = vld [vmem:[%s3 + $0x1f8] sm:$0xff]
      %v1203 = vld [vmem:[%s4] sm:$0x1]
      %v1205 = vlaneseq
      %v1206 = vshrl.u32 %v1205, 7
      %v1207 = vsub.s32 0, %v1206
      %v1208 = vrot.slane %v1203, %v1207
      %1210 = vmatprep.subr.mxu0 0.0
      %1211 = vmatpush1.msra.mxu0 %v1154
      %1212 = vmatprep.subr.mxu0 0.0
      %1213 = vmatpush1.msra.mxu0 %v1153
      %1214 = vmatprep.subr.mxu0 0.0
      %1215 = vmatpush1.msra.mxu0 %v1152
      %1216 = vmatprep.subr.mxu0 0.0
      %1217 = vmatpush1.msra.mxu0 %v1151
      %1218 = vmatprep.subr.mxu0 0.0
      %1219 = vmatpush1.msra.mxu0 %v1150
      %1220 = vmatprep.subr.mxu0 0.0
      %1221 = vmatpush1.msra.mxu0 %v1149
      %1222 = vmatprep.subr.mxu0 0.0
      %1223 = vmatpush1.msra.mxu0 %v1148
      %1224 = vmatprep.subr.mxu0 0.0
      %1225 = vmatpush1.msra.mxu0 %v1147
      %1226 = vmatprep.subr.mxu0 0.0
      %1227 = vmatpush1.msra.mxu0 %v1146
      %1228 = vmatprep.subr.mxu0 0.0
      %1229 = vmatpush1.msra.mxu0 %v1145
      %1230 = vmatprep.subr.mxu0 0.0
      %1231 = vmatpush1.msra.mxu0 %v1144
      %1232 = vmatprep.subr.mxu0 0.0
      %1233 = vmatpush1.msra.mxu0 %v1143
      %1234 = vmatprep.subr.mxu0 0.0
      %1235 = vmatpush1.msra.mxu0 %v1142
      %1236 = vmatprep.subr.mxu0 0.0
      %1237 = vmatpush1.msra.mxu0 %v1141
      %1238 = vmatprep.subr.mxu0 0.0
      %1239 = vmatpush1.msra.mxu0 %v1140
      %1240 = vmatprep.subr.mxu0 0.0
      %1241 = vmatpush1.msra.mxu0 %v1139
      %1242 = vmatprep.subr.mxu0 0.0
      %1243 = vmatpush2.msra.mxu0 %v1170
      %1244 = vmatprep.subr.mxu0 0.0
      %1245 = vmatpush2.msra.mxu0 %v1169
      %1246 = vmatprep.subr.mxu0 0.0
      %1247 = vmatpush2.msra.mxu0 %v1168
      %1248 = vmatprep.subr.mxu0 0.0
      %1249 = vmatpush2.msra.mxu0 %v1167
      %1250 = vmatprep.subr.mxu0 0.0
      %1251 = vmatpush2.msra.mxu0 %v1166
      %1252 = vmatprep.subr.mxu0 0.0
      %1253 = vmatpush2.msra.mxu0 %v1165
      %1254 = vmatprep.subr.mxu0 0.0
      %1255 = vmatpush2.msra.mxu0 %v1164
      %1256 = vmatprep.subr.mxu0 0.0
      %1257 = vmatpush2.msra.mxu0 %v1163
      %1258 = vmatprep.subr.mxu0 0.0
      %1259 = vmatpush2.msra.mxu0 %v1162
      %1260 = vmatprep.subr.mxu0 0.0
      %1261 = vmatpush2.msra.mxu0 %v1161
      %1262 = vmatprep.subr.mxu0 0.0
      %1263 = vmatpush2.msra.mxu0 %v1160
      %1264 = vmatprep.subr.mxu0 0.0
      %1265 = vmatpush2.msra.mxu0 %v1159
      %1266 = vmatprep.subr.mxu0 0.0
      %1267 = vmatpush2.msra.mxu0 %v1158
      %1268 = vmatprep.subr.mxu0 0.0
      %1269 = vmatpush2.msra.mxu0 %v1157
      %1270 = vmatprep.subr.mxu0 0.0
      %1271 = vmatpush2.msra.mxu0 %v1156
      %1272 = vmatprep.subr.mxu0 0.0
      %1273 = vmatpush2.msra.mxu0 %v1155
      %1274 = vmatprep.mubr.f32.mxu0 %v1124
      %1275 = vmatmul.mubr.f32.gmra.mxu0 %v1123
      %v1276 = vpop.f32.mrf.mxu0
      %v1277 = vadd.f32 %v1208, %v1276
      %v1278 = vpop.f32.mrf.mxu0
      %1279 = vmatprep.mubr.f32.mxu0 %v1128
      %1280 = vmatmul.mubr.f32.gmra.mxu0 %v1127
      %v1281 = vpop.f32.mrf.mxu0
      %v1282 = vadd.f32 %v1208, %v1281
      %v1283 = vpop.f32.mrf.mxu0
      %1284 = vmatprep.mubr.f32.mxu0 %v1132
      %1285 = vmatmul.mubr.f32.gmra.mxu0 %v1131
      %v1286 = vpop.f32.mrf.mxu0
      %v1287 = vadd.f32 %v1208, %v1286
      %v1288 = vpop.f32.mrf.mxu0
      %1289 = vmatprep.mubr.f32.mxu0 %v1136
      %1290 = vmatmul.mubr.f32.gmra.mxu0 %v1135
      %v1291 = vpop.f32.mrf.mxu0
      %v1292 = vadd.f32 %v1208, %v1291
      %v1293 = vpop.f32.mrf.mxu0
      %1294 = vdwg.mxu0
      %1295 = vmatprep.subr.mxu0 0.0
      %1296 = vmatpush1.msra.mxu0 %v1186
      %1297 = vmatprep.subr.mxu0 0.0
      %1298 = vmatpush1.msra.mxu0 %v1185
      %1299 = vmatprep.subr.mxu0 0.0
      %1300 = vmatpush1.msra.mxu0 %v1184
      %1301 = vmatprep.subr.mxu0 0.0
      %1302 = vmatpush1.msra.mxu0 %v1183
      %1303 = vmatprep.subr.mxu0 0.0
      %1304 = vmatpush1.msra.mxu0 %v1182
      %1305 = vmatprep.subr.mxu0 0.0
      %1306 = vmatpush1.msra.mxu0 %v1181
      %1307 = vmatprep.subr.mxu0 0.0
      %1308 = vmatpush1.msra.mxu0 %v1180
      %1309 = vmatprep.subr.mxu0 0.0
      %1310 = vmatpush1.msra.mxu0 %v1179
      %1311 = vmatprep.subr.mxu0 0.0
      %1312 = vmatpush1.msra.mxu0 %v1178
      %1313 = vmatprep.subr.mxu0 0.0
      %1314 = vmatpush1.msra.mxu0 %v1177
      %1315 = vmatprep.subr.mxu0 0.0
      %1316 = vmatpush1.msra.mxu0 %v1176
      %1317 = vmatprep.subr.mxu0 0.0
      %1318 = vmatpush1.msra.mxu0 %v1175
      %1319 = vmatprep.subr.mxu0 0.0
      %1320 = vmatpush1.msra.mxu0 %v1174
      %1321 = vmatprep.subr.mxu0 0.0
      %1322 = vmatpush1.msra.mxu0 %v1173
      %1323 = vmatprep.subr.mxu0 0.0
      %1324 = vmatpush1.msra.mxu0 %v1172
      %1325 = vmatprep.subr.mxu0 0.0
      %1326 = vmatpush1.msra.mxu0 %v1171
      %1327 = vmatprep.subr.mxu0 0.0
      %1328 = vmatpush2.msra.mxu0 %v1202
      %1329 = vmatprep.subr.mxu0 0.0
      %1330 = vmatpush2.msra.mxu0 %v1201
      %1331 = vmatprep.subr.mxu0 0.0
      %1332 = vmatpush2.msra.mxu0 %v1200
      %1333 = vmatprep.subr.mxu0 0.0
      %1334 = vmatpush2.msra.mxu0 %v1199
      %1335 = vmatprep.subr.mxu0 0.0
      %1336 = vmatpush2.msra.mxu0 %v1198
      %1337 = vmatprep.subr.mxu0 0.0
      %1338 = vmatpush2.msra.mxu0 %v1197
      %1339 = vmatprep.subr.mxu0 0.0
      %1340 = vmatpush2.msra.mxu0 %v1196
      %1341 = vmatprep.subr.mxu0 0.0
      %1342 = vmatpush2.msra.mxu0 %v1195
      %1343 = vmatprep.subr.mxu0 0.0
      %1344 = vmatpush2.msra.mxu0 %v1194
      %1345 = vmatprep.subr.mxu0 0.0
      %1346 = vmatpush2.msra.mxu0 %v1193
      %1347 = vmatprep.subr.mxu0 0.0
      %1348 = vmatpush2.msra.mxu0 %v1192
      %1349 = vmatprep.subr.mxu0 0.0
      %1350 = vmatpush2.msra.mxu0 %v1191
      %1351 = vmatprep.subr.mxu0 0.0
      %1352 = vmatpush2.msra.mxu0 %v1190
      %1353 = vmatprep.subr.mxu0 0.0
      %1354 = vmatpush2.msra.mxu0 %v1189
      %1355 = vmatprep.subr.mxu0 0.0
      %1356 = vmatpush2.msra.mxu0 %v1188
      %1357 = vmatprep.subr.mxu0 0.0
      %1358 = vmatpush2.msra.mxu0 %v1187
      %1359 = vmatprep.mubr.f32.mxu0 %v1126
      %1360 = vmatmul.mubr.f32.gmra.mxu0 %v1125
      %v1361 = vpop.f32.mrf.mxu0
      %v1362 = vadd.f32 %v1277, %v1361
      %v1363 = vpop.f32.mrf.mxu0
      %1364 = vmatprep.mubr.f32.mxu0 %v1130
      %1365 = vmatmul.mubr.f32.gmra.mxu0 %v1129
      %v1366 = vpop.f32.mrf.mxu0
      %v1367 = vadd.f32 %v1282, %v1366
      %v1368 = vpop.f32.mrf.mxu0
      %1369 = vmatprep.mubr.f32.mxu0 %v1134
      %1370 = vmatmul.mubr.f32.gmra.mxu0 %v1133
      %v1371 = vpop.f32.mrf.mxu0
      %v1372 = vadd.f32 %v1287, %v1371
      %v1373 = vpop.f32.mrf.mxu0
      %1374 = vmatprep.mubr.f32.mxu0 %v1138
      %1375 = vmatmul.mubr.f32.gmra.mxu0 %v1137
      %v1376 = vpop.f32.mrf.mxu0
      %v1377 = vadd.f32 %v1292, %v1376
      %v1378 = vpop.f32.mrf.mxu0
      %1379 = vdwg.mxu0
      %v1380 = vadd.f32 %v1362, %v301
      %v1381 = vadd.f32 %v1367, %v302
      %v1382 = vadd.f32 %v1372, %v303
      %v1383 = vadd.f32 %v1377, %v304
      %1384 = vst [vmem:[%s231] sm:$0xff] %v1380
      %1385 = vst [vmem:[%s231 + $0x8] sm:$0xff] %v1381
      %1386 = vst [vmem:[%s231 + $0x10] sm:$0xff] %v1382
      %1387 = vst [vmem:[%s231 + $0x18] sm:$0xff] %v1383
      %s1388 = smul.u32 2, %s16
      %p1389 = scmp.lt.s32.totalorder %s1388, 7
      %s1390 = scalar_select %p1389, %s1388, 7
      %s1391 = smul.addr %s1390, 2
      %s1392 = smul.addr %s1391, 8
      %s1393 = scalar_lea.vmem %s5, %s1392
      // Predicated region
      $region41: #{fused_mbconv_forward.1} parent=39 // pred_check
        %p1394 = pneg %p144
      $region42: #{fused_mbconv_forward.1} parent=39 // pred_check_branch
        %1396 = sbr.rel (%p1394) target = $region44
      $region43: #{fused_mbconv_forward.1} parent=39 // pred_region
        %s1397 = smul.u32 2, %s16
      $region44: #{fused_mbconv_forward.1} parent=39 // pred_fallthru
        _
    $region40: #{fused_mbconv_forward.1} parent=5 // pred_fallthru
      _
    %p1398 = scmp.le.s32.totalorder 2, %s11
    // Predicated region
    $region45: #{fused_mbconv_forward.1} parent=5 // pred_check
      %p1399 = pneg %p1398
    $region46: #{fused_mbconv_forward.1} parent=5 // pred_check_branch
      %1401 = sbr.rel (%p1399) target = $region48
    $region47: #{fused_mbconv_forward.1} parent=5 // pred_region
      %s1402 = ssub.s32 %s11, 2
      // Predicated region
      $region49: #{fused_mbconv_forward.1} parent=47 // pred_check
        %p1403 = pneg %p150
      $region50: #{fused_mbconv_forward.1} parent=47 // pred_check_branch
        %1405 = sbr.rel (%p1403) target = $region52
      $region51: #{fused_mbconv_forward.1} parent=47 // pred_region
        %s1406 = smul.u32 2, %s17
        %p1407 = scmp.lt.s32.totalorder %s1406, 7
        %s1408 = scalar_select %p1407, %s1406, 7
        %s1409 = smul.addr %s1408, 2
        %s1410 = smul.addr %s1409, 8
        %s1411 = scalar_lea.vmem %s5, %s1410
      $region52: #{fused_mbconv_forward.1} parent=47 // pred_fallthru
        _
    $region48: #{fused_mbconv_forward.1} parent=5 // pred_fallthru
      _
  $region6: #{fused_mbconv_forward.1} parent=0 // loop_footer
    %s15 = sadd.s32 1, %s11
  $region7: #{fused_mbconv_forward.1} parent=0 // loop_footer_branch
    %10 = sbr.rel target = $region3
  $region8: #{fused_mbconv_forward.1} parent=0 // loop_exit
    _

</llo_original>
